<compile_context>
chip_gen: v7x
topology: tpu7x:2x2x1
jax: 0.10.0
libtpu: 0.0.40
codegen_flags: <defaults>
</compile_context>

<pallas_src>
import jax
import jax.numpy as jnp
from jax import lax
from jax.experimental import pallas as pl
from jax.experimental.pallas import tpu as pltpu


def _vmem_limit_bytes():
    """Generation-aware VMEM limit: ~75% of physical, capped at 100 MiB.

    v5e/v6e (128 MiB physical) -> 96 MiB; v7x (64 MiB per TC) -> 48 MiB.
    """
    try:
        cap = pltpu.get_tpu_info().vmem_capacity_bytes
    except Exception:
        cap = 64 * 1024 * 1024  # conservative (v7x per-TC) fallback
    return int(min(cap * 3 // 4, 100 * 1024 * 1024))


# ----------------------------------------------------------------------------------
# Stage 1: masked-mean pool + project + L2-normalise, gridded over the batch
# ----------------------------------------------------------------------------------
def _embed_kernel(hid_ref, mask_ref, img_ref, w_ref, b_ref, img_out_ref, txt_out_ref):
    # Masked mean pooling on the VPU (elementwise mul) + sublane reduce over L.
    # Keeps the MXU entirely free for the projection matmul below.
    mask = mask_ref[...]                                               # (bt, L) f32
    hid = hid_ref[...].astype(jnp.float32)                             # (bt, L, H)
    pooled = jnp.sum(hid * mask[:, :, None], axis=1)                   # (bt, H) f32
    denom = jnp.sum(mask, axis=1, keepdims=True)                       # (bt, 1)
    pooled = pooled * pl.reciprocal(jnp.maximum(denom, 1e-9), approx=True)

    # text_projection: nn.Linear(H, P).  Weight stays (P, H) (no host transpose);
    # contract on H with the MXU, f32 accumulation.
    txt = lax.dot_general(
        pooled.astype(jnp.bfloat16), w_ref[...],
        (((1,), (1,)), ((), ())),
        preferred_element_type=jnp.float32) + b_ref[...]               # (bt, P) f32

    # torch "x / (norm + 1e-8)" semantics; the divide is an EUP reciprocal.
    txt_inv = pl.reciprocal(
        jnp.sqrt(jnp.sum(txt * txt, axis=-1, keepdims=True)) + 1e-8, approx=True)
    img = img_ref[...].astype(jnp.float32)
    img_inv = pl.reciprocal(
        jnp.sqrt(jnp.sum(img * img, axis=-1, keepdims=True)) + 1e-8, approx=True)

    img_out_ref[...] = (img * img_inv).astype(img_out_ref.dtype)
    txt_out_ref[...] = (txt * txt_inv).astype(txt_out_ref.dtype)


# ----------------------------------------------------------------------------------
# Stage 2: fused symmetric CLIP loss.
#   Each grid step computes one (bl, B) logits tile (full text matrix resident in VMEM)
#   and accumulates:
#     * img->txt : plain lane-axis logsumexp, per-row loss summed into a (1,1) scalar
#     * txt->img : online sublane logsumexp across row blocks in lane-dense (1,B) scratch
#   Finalized to a single scalar loss on the last step.
# ----------------------------------------------------------------------------------
def _loss_kernel(scale_ref, img_ref, txt_ref, loss_ref, m_col, s_col, acc_ref):
    i = pl.program_id(0)
    nblk = pl.num_programs(0)

    @pl.when(i == 0)
    def _():
        m_col[...] = jnp.full_like(m_col, -jnp.inf)
        s_col[...] = jnp.zeros_like(s_col)
        acc_ref[...] = jnp.zeros_like(acc_ref)

    scale = scale_ref[0, 0]
    # One (bl, B) logits tile; both loss directions are derived from it.
    logits = scale * lax.dot_general(
        img_ref[...], txt_ref[...], (((1,), (1,)), ((), ())),
        preferred_element_type=jnp.float32)                            # (bl, B) f32

    bl, B = logits.shape
    rows = lax.broadcasted_iota(jnp.int32, (bl, B), 0)
    cols = lax.broadcasted_iota(jnp.int32, (bl, B), 1)
    diag_mask = cols == i * bl + rows                                  # positive pairs

    # img -> txt : full row (length B) is in-tile, so a plain lane-axis logsumexp.
    m_row = jnp.max(logits, axis=-1, keepdims=True)                    # (bl, 1)
    lse_row = m_row + jnp.log(
        jnp.sum(jnp.exp(logits - m_row), axis=-1, keepdims=True))      # (bl, 1)
    diag_row = jnp.sum(jnp.where(diag_mask, logits, 0.0),
                       axis=-1, keepdims=True)                         # (bl, 1)
    # Accumulate sum_r(lse_row - diag) and pre-subtract the diag of the txt->img
    # direction too (same values), so no per-column diag scratch is needed.
    acc_ref[...] += jnp.sum(lse_row - 2.0 * diag_row)

    # txt -> img : online sublane logsumexp accumulated across row blocks (lane-dense).
    m_blk = jnp.max(logits, axis=0, keepdims=True)                     # (1, B)
    m_new = jnp.maximum(m_col[...], m_blk)
    s_col[...] = (jnp.exp(m_col[...] - m_new) * s_col[...]
                  + jnp.sum(jnp.exp(logits - m_new), axis=0, keepdims=True))
    m_col[...] = m_new

    @pl.when(i == nblk - 1)
    def _():
        lse_col_sum = jnp.sum(m_col[...] + jnp.log(s_col[...]))        # scalar
        loss_ref[...] = (acc_ref[...] + lse_col_sum) * (0.5 / float(B))


def _pick_block(n, fits, candidates=(256, 128, 64, 32, 16, 8)):
    """Largest divisor of n that fits VMEM; prefer >=2 blocks so v7x uses both TCs."""
    divs = [c for c in candidates if n % c == 0 and fits(c)]
    if not divs:
        return n
    multi = [c for c in divs if n // c >= 2]
    return multi[0] if multi else divs[0]


def clip_forward(image_feats, text_hidden, attn_mask, w_proj, b_proj, logit_scale,
                 *, block_rows=None, block_logits=None):
    """Fused CLIP.forward hot path (pool + project + normalise + contrastive loss)."""
    B, L, H = text_hidden.shape
    P, H2 = w_proj.shape
    assert H2 == H and image_feats.shape == (B, P)

    vmem_limit = _vmem_limit_bytes()
    budget = vmem_limit // 2  # headroom for compiler scratch / pipeline misc.

    def fits_embed(bt):
        per_step = bt * L * H * 2 + bt * L * 4 + bt * P * 2 + 2 * bt * P * 2
        resident = P * H * 2 + P * 4
        return 2 * per_step + resident <= budget

    def fits_loss(bl):
        per_step = bl * P * 2 + bl * B * 4
        resident = B * P * 2 + 4 * B * 4
        return 2 * per_step + resident <= budget

    bt = block_rows or _pick_block(B, fits_embed)
    bl = block_logits or _pick_block(B, fits_loss)
    assert B % bt == 0 and B % bl == 0, "batch must be divisible by the block sizes"

    # bf16 at the HBM boundary (halves DMA / VMEM); matmuls accumulate f32.
    hid_bf = text_hidden.astype(jnp.bfloat16)                     # (B, L, H)
    img_bf = image_feats.astype(jnp.bfloat16)                     # (B, P)
    w_bf = w_proj.astype(jnp.bfloat16)                            # (P, H) -- NOT transposed
    mask_f = attn_mask.astype(jnp.float32)                        # (B, L)
    b_f = b_proj.reshape(1, P).astype(jnp.float32)                # (1, P)
    scale = jnp.exp(logit_scale.astype(jnp.float32)).reshape(1, 1)  # scalar in SMEM

    img_n, txt_n = pl.pallas_call(
        _embed_kernel,
        grid=(B // bt,),
        out_shape=(jax.ShapeDtypeStruct((B, P), jnp.bfloat16),
                   jax.ShapeDtypeStruct((B, P), jnp.bfloat16)),
        in_specs=[
            pl.BlockSpec((bt, L, H), lambda i: (i, 0, 0)),        # text hidden states
            pl.BlockSpec((bt, L), lambda i: (i, 0)),              # attention mask
            pl.BlockSpec((bt, P), lambda i: (i, 0)),              # image features
            pl.BlockSpec((P, H), lambda i: (0, 0)),               # projection weight
            pl.BlockSpec((1, P), lambda i: (0, 0)),               # projection bias
        ],
        out_specs=(pl.BlockSpec((bt, P), lambda i: (i, 0)),
                   pl.BlockSpec((bt, P), lambda i: (i, 0))),
        compiler_params=pltpu.CompilerParams(
            dimension_semantics=("parallel",),
            vmem_limit_bytes=vmem_limit),
    )(hid_bf, mask_f, img_bf, w_bf, b_f)

    nblk = B // bl
    loss = pl.pallas_call(
        _loss_kernel,
        grid=(nblk,),
        out_shape=jax.ShapeDtypeStruct((1, 1), jnp.float32),
        in_specs=[
            pl.BlockSpec(memory_space=pltpu.MemorySpace.SMEM),    # scale (1,1) scalar
            pl.BlockSpec((bl, P), lambda i: (i, 0)),              # image-embedding rows
            pl.BlockSpec((B, P), lambda i: (0, 0)),               # full text embeddings
        ],
        out_specs=pl.BlockSpec((1, 1), lambda i: (0, 0)),
        scratch_shapes=[pltpu.VMEM((1, B), jnp.float32),          # m_col (online max)
                        pltpu.VMEM((1, B), jnp.float32),          # s_col (online sum)
                        pltpu.VMEM((1, 1), jnp.float32)],         # scalar accumulator
        compiler_params=pltpu.CompilerParams(
            # Column-direction accumulators carry state across row blocks -> "arbitrary".
            # TODO(synk): on v7x this forfeits 2-TC sharding of stage 2; shard an outer
            #             batch split across TCs if stage 2 ever dominates there.
            dimension_semantics=("arbitrary",),
            vmem_limit_bytes=vmem_limit),
    )(scale, img_n, txt_n)

    return loss[0, 0]


def _reference(image_feats, text_hidden, attn_mask, w_proj, b_proj, logit_scale):
    """f32 reference of the same algorithm, emulating the kernel's bf16 boundaries."""
    f32 = lambda x: x.astype(jnp.float32)
    bf = lambda x: x.astype(jnp.bfloat16).astype(jnp.float32)
    hid, img, w = bf(text_hidden), bf(image_feats), bf(w_proj)
    mask = f32(attn_mask)[:, :, None]
    pooled = (hid * mask).sum(1) / jnp.maximum(mask.sum(1), 1e-9)
    txt = bf(pooled) @ w.T + f32(b_proj)
    txt = txt / (jnp.linalg.norm(txt, axis=-1, keepdims=True) + 1e-8)
    img = img / (jnp.linalg.norm(img, axis=-1, keepdims=True) + 1e-8)
    txt_b, img_b = bf(txt), bf(img)
    logits = jnp.exp(f32(logit_scale)[0]) * (img_b @ txt_b.T)
    labels = jnp.arange(logits.shape[0])

    def ce(lg):
        return jnp.mean(jax.nn.logsumexp(lg, axis=1) - lg[labels, labels])

    return 0.5 * (ce(logits) + ce(logits.T))


if __name__ == "__main__":
    # Small shapes consistent with the module: batch=64, seq=16, hidden=128, proj=128.
    B, L, H, P = 64, 16, 128, 128
    key = jax.random.PRNGKey(0)
    k1, k2, k3, k4, k5 = jax.random.split(key, 5)

    # "images" = features from the frozen timm vision tower, "texts" = HF hidden states.
    image_feats = jax.random.normal(k1, (B, P), jnp.float32)
    text_hidden = jax.random.normal(k2, (B, L, H), jnp.float32)
    lengths = jax.random.randint(k5, (B,), 1, L + 1)
    attn_mask = (jnp.arange(L)[None, :] < lengths[:, None]).astype(jnp.float32)

    # text_projection: nn.Linear(H, P); logit_scale init = log(1/0.07) as in __init__.
    w_proj = jax.random.normal(k3, (P, H), jnp.float32) * (1.0 / jnp.sqrt(H))
    b_proj = jax.random.normal(k4, (P,), jnp.float32) * 0.01
    logit_scale = jnp.array([jnp.log(1.0 / 0.07)], jnp.float32)

    loss = clip_forward(image_feats, text_hidden, attn_mask, w_proj, b_proj,
                        logit_scale)
    loss = jax.block_until_ready(loss)

    ref = _reference(image_feats, text_hidden, attn_mask, w_proj, b_proj, logit_scale)
    if not jnp.allclose(loss, ref, rtol=2e-2, atol=2e-2):
        raise AssertionError(f"mismatch: kernel={loss} ref={ref}")

    print("KERNEL_OK")
</pallas_src>

<mosaic_0001>
module attributes {stable_mosaic.version = 11 : i64} {
  func.func @_embed_kernel(%arg0: i32, %arg1: memref<32x16x128xbf16, #tpu.memory_space<vmem>>, %arg2: memref<32x16xf32, #tpu.memory_space<vmem>>, %arg3: memref<32x128xbf16, #tpu.memory_space<vmem>>, %arg4: memref<128x128xbf16, #tpu.memory_space<vmem>>, %arg5: memref<1x128xf32, #tpu.memory_space<vmem>>, %arg6: memref<32x128xbf16, #tpu.memory_space<vmem>>, %arg7: memref<32x128xbf16, #tpu.memory_space<vmem>>) attributes {dimension_semantics = [#tpu.dimension_semantics<parallel>], iteration_bounds = array<i64: 2>, scalar_prefetch = 0 : i64, scratch_operands = 0 : i64, tpu.core_type = #tpu.core_type<tc>, window_params = [{transform_indices = @transform_0, window_bounds = array<i64: 32, 16, 128>}, {transform_indices = @transform_1, window_bounds = array<i64: 32, 16>}, {transform_indices = @transform_2, window_bounds = array<i64: 32, 128>}, {pipeline_mode = #tpu.pipeline_mode<synchronous>, transform_indices = @transform_3, window_bounds = array<i64: 128, 128>}, {pipeline_mode = #tpu.pipeline_mode<synchronous>, transform_indices = @transform_4, window_bounds = array<i64: 1, 128>}, {transform_indices = @transform_5, window_bounds = array<i64: 32, 128>}, {transform_indices = @transform_6, window_bounds = array<i64: 32, 128>}]} {
    %c0 = arith.constant 0 : index
    %c0_0 = arith.constant 0 : index
    %0 = vector.load %arg2[%c0, %c0_0] : memref<32x16xf32, #tpu.memory_space<vmem>>, vector<32x16xf32>
    %c0_1 = arith.constant 0 : index
    %c0_2 = arith.constant 0 : index
    %c0_3 = arith.constant 0 : index
    %1 = vector.load %arg1[%c0_1, %c0_2, %c0_3] : memref<32x16x128xbf16, #tpu.memory_space<vmem>>, vector<32x16x128xbf16>
    %2 = arith.extf %1 : vector<32x16x128xbf16> to vector<32x16x128xf32>
    %3 = vector.shape_cast %0 : vector<32x16xf32> to vector<32x16x1xf32>
    %4 = vector.broadcast %3 : vector<32x16x1xf32> to vector<32x16x128xf32>
    %5 = arith.mulf %2, %4 : vector<32x16x128xf32>
    %cst = arith.constant dense<0.000000e+00> : vector<32x128xf32>
    %6 = vector.multi_reduction <add>, %5, %cst [1] : vector<32x16x128xf32> to vector<32x128xf32>
    %cst_4 = arith.constant dense<0.000000e+00> : vector<32xf32>
    %7 = vector.multi_reduction <add>, %0, %cst_4 [1] : vector<32x16xf32> to vector<32xf32>
    %8 = vector.shape_cast %7 : vector<32xf32> to vector<32x1xf32>
    %cst_5 = arith.constant 9.99999971E-10 : f32
    %9 = vector.broadcast %cst_5 : f32 to vector<32x1xf32>
    %10 = arith.maximumf %8, %9 : vector<32x1xf32>
    %11 = tpu.reciprocal %10 {approx = true} : vector<32x1xf32> -> vector<32x1xf32>
    %12 = vector.broadcast %11 : vector<32x1xf32> to vector<32x128xf32>
    %13 = arith.mulf %6, %12 : vector<32x128xf32>
    %14 = arith.truncf %13 : vector<32x128xf32> to vector<32x128xbf16>
    %c0_6 = arith.constant 0 : index
    %c0_7 = arith.constant 0 : index
    %15 = vector.load %arg4[%c0_6, %c0_7] : memref<128x128xbf16, #tpu.memory_space<vmem>>, vector<128x128xbf16>
    %cst_8 = arith.constant dense<0.000000e+00> : vector<32x128xf32>
    %16 = tpu.matmul %14, %15, %cst_8 {dimension_numbers = #tpu.dot_dimension_numbers<[1], [1], [0], [0], [0, 0, 1, 0], [], []>} : vector<32x128xbf16>, vector<128x128xbf16>, vector<32x128xf32> -> vector<32x128xf32>
    %c0_9 = arith.constant 0 : index
    %c0_10 = arith.constant 0 : index
    %17 = vector.load %arg5[%c0_9, %c0_10] : memref<1x128xf32, #tpu.memory_space<vmem>>, vector<1x128xf32>
    %18 = vector.broadcast %17 : vector<1x128xf32> to vector<32x128xf32>
    %19 = arith.addf %16, %18 : vector<32x128xf32>
    %20 = arith.mulf %19, %19 : vector<32x128xf32>
    %cst_11 = arith.constant dense<0.000000e+00> : vector<32xf32>
    %21 = vector.multi_reduction <add>, %20, %cst_11 [1] : vector<32x128xf32> to vector<32xf32>
    %22 = vector.shape_cast %21 : vector<32xf32> to vector<32x1xf32>
    %23 = math.sqrt %22 : vector<32x1xf32>
    %cst_12 = arith.constant 9.99999993E-9 : f32
    %24 = vector.broadcast %cst_12 : f32 to vector<32x1xf32>
    %25 = arith.addf %23, %24 : vector<32x1xf32>
    %26 = tpu.reciprocal %25 {approx = true} : vector<32x1xf32> -> vector<32x1xf32>
    %c0_13 = arith.constant 0 : index
    %c0_14 = arith.constant 0 : index
    %27 = vector.load %arg3[%c0_13, %c0_14] : memref<32x128xbf16, #tpu.memory_space<vmem>>, vector<32x128xbf16>
    %28 = arith.extf %27 : vector<32x128xbf16> to vector<32x128xf32>
    %29 = arith.mulf %28, %28 : vector<32x128xf32>
    %cst_15 = arith.constant dense<0.000000e+00> : vector<32xf32>
    %30 = vector.multi_reduction <add>, %29, %cst_15 [1] : vector<32x128xf32> to vector<32xf32>
    %31 = vector.shape_cast %30 : vector<32xf32> to vector<32x1xf32>
    %32 = math.sqrt %31 : vector<32x1xf32>
    %cst_16 = arith.constant 9.99999993E-9 : f32
    %33 = vector.broadcast %cst_16 : f32 to vector<32x1xf32>
    %34 = arith.addf %32, %33 : vector<32x1xf32>
    %35 = tpu.reciprocal %34 {approx = true} : vector<32x1xf32> -> vector<32x1xf32>
    %36 = vector.broadcast %35 : vector<32x1xf32> to vector<32x128xf32>
    %37 = arith.mulf %28, %36 : vector<32x128xf32>
    %38 = arith.truncf %37 : vector<32x128xf32> to vector<32x128xbf16>
    %c0_17 = arith.constant 0 : index
    %c0_18 = arith.constant 0 : index
    %39 = vector.load %arg6[%c0_17, %c0_18] : memref<32x128xbf16, #tpu.memory_space<vmem>>, vector<32x128xbf16>
    tpu.vector_store %arg6[%c0_17, %c0_18], %38 {strides = array<i32>} : memref<32x128xbf16, #tpu.memory_space<vmem>>, vector<32x128xbf16>,
    %40 = vector.broadcast %26 : vector<32x1xf32> to vector<32x128xf32>
    %41 = arith.mulf %19, %40 : vector<32x128xf32>
    %42 = arith.truncf %41 : vector<32x128xf32> to vector<32x128xbf16>
    %c0_19 = arith.constant 0 : index
    %c0_20 = arith.constant 0 : index
    %43 = vector.load %arg7[%c0_19, %c0_20] : memref<32x128xbf16, #tpu.memory_space<vmem>>, vector<32x128xbf16>
    tpu.vector_store %arg7[%c0_19, %c0_20], %42 {strides = array<i32>} : memref<32x128xbf16, #tpu.memory_space<vmem>>, vector<32x128xbf16>,
    return
  }
  func.func @transform_0(%arg0: i32) -> (i32, i32, i32) {
    %c0_i32 = arith.constant 0 : i32
    %c0_i32_0 = arith.constant 0 : i32
    %c0_i32_1 = arith.constant 0 : i32
    return %arg0, %c0_i32, %c0_i32_0 : i32, i32, i32
  }
  func.func @transform_1(%arg0: i32) -> (i32, i32) {
    %c0_i32 = arith.constant 0 : i32
    %c0_i32_0 = arith.constant 0 : i32
    return %arg0, %c0_i32 : i32, i32
  }
  func.func @transform_2(%arg0: i32) -> (i32, i32) {
    %c0_i32 = arith.constant 0 : i32
    %c0_i32_0 = arith.constant 0 : i32
    return %arg0, %c0_i32 : i32, i32
  }
  func.func @transform_3(%arg0: i32) -> (i32, i32) {
    %c0_i32 = arith.constant 0 : i32
    %c0_i32_0 = arith.constant 0 : i32
    %c0_i32_1 = arith.constant 0 : i32
    return %c0_i32, %c0_i32_0 : i32, i32
  }
  func.func @transform_4(%arg0: i32) -> (i32, i32) {
    %c0_i32 = arith.constant 0 : i32
    %c0_i32_0 = arith.constant 0 : i32
    %c0_i32_1 = arith.constant 0 : i32
    return %c0_i32, %c0_i32_0 : i32, i32
  }
  func.func @transform_5(%arg0: i32) -> (i32, i32) {
    %c0_i32 = arith.constant 0 : i32
    %c0_i32_0 = arith.constant 0 : i32
    return %arg0, %c0_i32 : i32, i32
  }
  func.func @transform_6(%arg0: i32) -> (i32, i32) {
    %c0_i32 = arith.constant 0 : i32
    %c0_i32_0 = arith.constant 0 : i32
    return %arg0, %c0_i32 : i32, i32
  }
}

</mosaic_0001>

<llo_original>
// kernel: tpu_custom_call.1
$region0: #{tpu_custom_call.1}
  #allocation0 [shape = 'u32[]', space=smem, size = 0x4, offset = 0x4, fixed_abs, tag = 'smem constant byte address 0x4 - core index']
  #allocation1 [shape = 'u32[144,128]{1,0:T(1,128)}', space=vmem, size = 0x12000, scoped, tag = 'internal scratch']
  %s0 = inlined_call_operand.hbm [shape: bf16[64,16,128], index: 0, kind: input, shape index: {}]
  %s1 = inlined_call_operand.vmem [shape: f32[64,16], index: 1, kind: input, shape index: {}]
  %s2 = inlined_call_operand.hbm [shape: bf16[64,128], index: 2, kind: input, shape index: {}]
  %s3 = inlined_call_operand.vmem [shape: bf16[128,128], index: 3, kind: input, shape index: {}]
  %s4 = inlined_call_operand.vmem [shape: f32[1,128], index: 4, kind: input, shape index: {}]
  %s5 = inlined_call_operand.hbm [shape: bf16[64,128], index: 5, kind: output, shape index: {0}]
  %s6 = inlined_call_operand.hbm [shape: bf16[64,128], index: 6, kind: output, shape index: {1}]
  %7 = xla_tuple %s5, %s6
  %s8 = sld [smem:[#allocation0]]
  $region69: #{tpu_custom_call.1} parent=0
    _
  %s10 = ssub.s32 1, %s8
  %s11 = scalar_select 0, %s10, %s8
  $region1: #{tpu_custom_call.1} parent=0
    #allocation2 [shape = 'u8[262144]{0}', space=vmem, size = 0x40000, scoped, tag = 'input window, operand 0']
    #allocation3 [shape = 's32[2]{0}', space=sflag, size = 0x8, scoped, tag = 'scoped memory for tpu_custom_call.1']
    #allocation4 [shape = 's32[2]{0}', space=sflag, size = 0x8, scoped, tag = 'scoped memory for tpu_custom_call.1']
    #allocation5 [shape = 'u8[16384]{0}', space=vmem, size = 0x4000, scoped, tag = 'input window, operand 2']
    #allocation6 [shape = 's32[2]{0}', space=sflag, size = 0x8, scoped, tag = 'scoped memory for tpu_custom_call.1']
    #allocation7 [shape = 'u8[16384]{0}', space=vmem, size = 0x4000, scoped, tag = 'output window, operand 0']
    #allocation8 [shape = 'u8[16384]{0}', space=vmem, size = 0x4000, scoped, tag = 'output window, operand 1']
    #allocation9 [shape = 's32[2]{0}', space=sflag, size = 0x8, scoped, tag = 'scoped memory for tpu_custom_call.1']
    %12 = vsyncpa [#allocation3], 0
    %s13 = scalar_lea.sflag [#allocation3], 1
    %14 = vsyncpa %s13, 0
    %15 = vsyncpa [#allocation6], 0
    %s16 = scalar_lea.sflag [#allocation6], 1
    %17 = vsyncpa %s16, 0
    %18 = vsyncpa [#allocation4], 0
    %s19 = scalar_lea.sflag [#allocation4], 1
    %20 = vsyncpa %s19, 0
    %21 = vsyncpa [#allocation9], 0
    %s22 = scalar_lea.sflag [#allocation9], 1
    %23 = vsyncpa %s22, 0
    loop: start=0, step=1, limit=4
    $region2: #{tpu_custom_call.1} parent=1 // loop_pre_header
      _
    $region3: #{tpu_custom_call.1} parent=1 // loop_header
      %s25 = sphi 0, %s29
      %p26 = scmp.ge.s32.totalorder %s25, 4
      %s35 = sphi 0, %s37
      %s38 = sphi 0, %s35
      %s39 = sphi 0, %s38
      %s55 = sphi 0, %s39
      %s61 = sphi 0, %s63
      %s64 = sphi 0, %s61
      %s65 = sphi 0, %s64
      %s81 = sphi 0, %s65
      %s87 = sphi 0, %s89
      %s90 = sphi 0, %s87
      %s91 = sphi 0, %s90
      %s107 = sphi 0, %s91
      %s111 = sphi 0, %s111
      %s113 = sphi 0, %s111
      %s114 = sphi 0, %s113
      %s128 = sphi 0, %s114
      %s132 = sphi 0, %s132
      %s134 = sphi 0, %s132
      %s135 = sphi 0, %s134
      %s149 = sphi 0, %s135
      %s155 = sphi 0, %s157
      %s158 = sphi 0, %s155
      %s159 = sphi 0, %s158
      %s175 = sphi 0, %s159
      %s181 = sphi 0, %s183
      %s184 = sphi 0, %s181
      %s185 = sphi 0, %s184
      %s201 = sphi 0, %s185
    $region4: #{tpu_custom_call.1} parent=1 // loop_header_branch
      %28 = sbr.rel (%p26) target = $region8
    $region5: #{tpu_custom_call.1} parent=1 // loop_body
      %s30 = ssub.s32 %s25, 1
      %s31 = ssub.s32 %s25, 2
      %s32 = sadd.s32 %s25, 1
      %s33 = ssub.s32 %s25, %s32
      %p34 = scmp.eq.s32.totalorder %s33, 0
      %s36 = sadd.s32 %s35, 1
      %s37 = scalar_select %p34, %s35, %s36
      %p40 = pneg %p34
      %p41 = scmp.eq.s32.totalorder %s25, 1
      %p42 = por %p40, %p41
      %p43 = scmp.ne.s32.totalorder %s35, %s38
      %p44 = scmp.eq.s32.totalorder %s25, 0
      %p45 = por %p43, %p44
      %p46 = scmp.ne.s32.totalorder %s35, %s38
      %p47 = scmp.eq.s32.totalorder %s30, 1
      %p48 = por %p46, %p47
      %p49 = scmp.ne.s32.totalorder %s38, %s39
      %p50 = scmp.eq.s32.totalorder %s30, 0
      %p51 = por %p49, %p50
      %p52 = scmp.ne.s32.totalorder %s38, %s39
      %p53 = scmp.eq.s32.totalorder %s31, 1
      %p54 = por %p52, %p53
      %p56 = scmp.ne.s32.totalorder %s39, %s55
      %p57 = scmp.eq.s32.totalorder %s31, 0
      %p58 = por %p56, %p57
      %s59 = ssub.s32 %s25, %s32
      %p60 = scmp.eq.s32.totalorder %s59, 0
      %s62 = sadd.s32 %s61, 1
      %s63 = scalar_select %p60, %s61, %s62
      %p66 = pneg %p60
      %p67 = scmp.eq.s32.totalorder %s25, 1
      %p68 = por %p66, %p67
      %p69 = scmp.ne.s32.totalorder %s61, %s64
      %p70 = scmp.eq.s32.totalorder %s25, 0
      %p71 = por %p69, %p70
      %p72 = scmp.ne.s32.totalorder %s61, %s64
      %p73 = scmp.eq.s32.totalorder %s30, 1
      %p74 = por %p72, %p73
      %p75 = scmp.ne.s32.totalorder %s64, %s65
      %p76 = scmp.eq.s32.totalorder %s30, 0
      %p77 = por %p75, %p76
      %p78 = scmp.ne.s32.totalorder %s64, %s65
      %p79 = scmp.eq.s32.totalorder %s31, 1
      %p80 = por %p78, %p79
      %p82 = scmp.ne.s32.totalorder %s65, %s81
      %p83 = scmp.eq.s32.totalorder %s31, 0
      %p84 = por %p82, %p83
      %s85 = ssub.s32 %s25, %s32
      %p86 = scmp.eq.s32.totalorder %s85, 0
      %s88 = sadd.s32 %s87, 1
      %s89 = scalar_select %p86, %s87, %s88
      %p92 = pneg %p86
      %p93 = scmp.eq.s32.totalorder %s25, 1
      %p94 = por %p92, %p93
      %p95 = scmp.ne.s32.totalorder %s87, %s90
      %p96 = scmp.eq.s32.totalorder %s25, 0
      %p97 = por %p95, %p96
      %p98 = scmp.ne.s32.totalorder %s87, %s90
      %p99 = scmp.eq.s32.totalorder %s30, 1
      %p100 = por %p98, %p99
      %p101 = scmp.ne.s32.totalorder %s90, %s91
      %p102 = scmp.eq.s32.totalorder %s30, 0
      %p103 = por %p101, %p102
      %p104 = scmp.ne.s32.totalorder %s90, %s91
      %p105 = scmp.eq.s32.totalorder %s31, 1
      %p106 = por %p104, %p105
      %p108 = scmp.ne.s32.totalorder %s91, %s107
      %p109 = scmp.eq.s32.totalorder %s31, 0
      %p110 = por %p108, %p109
      %s112 = sadd.s32 %s111, 1
      %p115 = scmp.eq.s32.totalorder %s25, 1
      %p116 = scmp.ne.s32.totalorder %s111, %s113
      %p117 = scmp.eq.s32.totalorder %s25, 0
      %p118 = por %p116, %p117
      %p119 = scmp.ne.s32.totalorder %s111, %s113
      %p120 = scmp.eq.s32.totalorder %s30, 1
      %p121 = por %p119, %p120
      %p122 = scmp.ne.s32.totalorder %s113, %s114
      %p123 = scmp.eq.s32.totalorder %s30, 0
      %p124 = por %p122, %p123
      %p125 = scmp.ne.s32.totalorder %s113, %s114
      %p126 = scmp.eq.s32.totalorder %s31, 1
      %p127 = por %p125, %p126
      %p129 = scmp.ne.s32.totalorder %s114, %s128
      %p130 = scmp.eq.s32.totalorder %s31, 0
      %p131 = por %p129, %p130
      %s133 = sadd.s32 %s132, 1
      %p136 = scmp.eq.s32.totalorder %s25, 1
      %p137 = scmp.ne.s32.totalorder %s132, %s134
      %p138 = scmp.eq.s32.totalorder %s25, 0
      %p139 = por %p137, %p138
      %p140 = scmp.ne.s32.totalorder %s132, %s134
      %p141 = scmp.eq.s32.totalorder %s30, 1
      %p142 = por %p140, %p141
      %p143 = scmp.ne.s32.totalorder %s134, %s135
      %p144 = scmp.eq.s32.totalorder %s30, 0
      %p145 = por %p143, %p144
      %p146 = scmp.ne.s32.totalorder %s134, %s135
      %p147 = scmp.eq.s32.totalorder %s31, 1
      %p148 = por %p146, %p147
      %p150 = scmp.ne.s32.totalorder %s135, %s149
      %p151 = scmp.eq.s32.totalorder %s31, 0
      %p152 = por %p150, %p151
      %s153 = ssub.s32 %s25, %s32
      %p154 = scmp.eq.s32.totalorder %s153, 0
      %s156 = sadd.s32 %s155, 1
      %s157 = scalar_select %p154, %s155, %s156
      %p160 = pneg %p154
      %p161 = scmp.eq.s32.totalorder %s25, 1
      %p162 = por %p160, %p161
      %p163 = scmp.ne.s32.totalorder %s155, %s158
      %p164 = scmp.eq.s32.totalorder %s25, 0
      %p165 = por %p163, %p164
      %p166 = scmp.ne.s32.totalorder %s155, %s158
      %p167 = scmp.eq.s32.totalorder %s30, 1
      %p168 = por %p166, %p167
      %p169 = scmp.ne.s32.totalorder %s158, %s159
      %p170 = scmp.eq.s32.totalorder %s30, 0
      %p171 = por %p169, %p170
      %p172 = scmp.ne.s32.totalorder %s158, %s159
      %p173 = scmp.eq.s32.totalorder %s31, 1
      %p174 = por %p172, %p173
      %p176 = scmp.ne.s32.totalorder %s159, %s175
      %p177 = scmp.eq.s32.totalorder %s31, 0
      %p178 = por %p176, %p177
      %s179 = ssub.s32 %s25, %s32
      %p180 = scmp.eq.s32.totalorder %s179, 0
      %s182 = sadd.s32 %s181, 1
      %s183 = scalar_select %p180, %s181, %s182
      %p186 = pneg %p180
      %p187 = scmp.eq.s32.totalorder %s25, 1
      %p188 = por %p186, %p187
      %p189 = scmp.ne.s32.totalorder %s181, %s184
      %p190 = scmp.eq.s32.totalorder %s25, 0
      %p191 = por %p189, %p190
      %p192 = scmp.ne.s32.totalorder %s181, %s184
      %p193 = scmp.eq.s32.totalorder %s30, 1
      %p194 = por %p192, %p193
      %p195 = scmp.ne.s32.totalorder %s184, %s185
      %p196 = scmp.eq.s32.totalorder %s30, 0
      %p197 = por %p195, %p196
      %p198 = scmp.ne.s32.totalorder %s184, %s185
      %p199 = scmp.eq.s32.totalorder %s31, 1
      %p200 = por %p198, %p199
      %p202 = scmp.ne.s32.totalorder %s185, %s201
      %p203 = scmp.eq.s32.totalorder %s31, 0
      %p204 = por %p202, %p203
      %p205 = scmp.le.s32.totalorder 1, %s25
      %p206 = scmp.lt.s32.totalorder %s25, 3
      %p207 = pnand %p205, %p206
      %p208 = pneg %p207
      // Predicated region
      $region9: #{tpu_custom_call.1} parent=5 // pred_check
        _
      $region10: #{tpu_custom_call.1} parent=5 // pred_check_branch
        %210 = sbr.rel (%p207) target = $region12
      $region11: #{tpu_custom_call.1} parent=5 // pred_region
        %s211 = ssub.s32 %s25, 1
        // Predicated region
        $region13: #{tpu_custom_call.1} parent=11 // pred_check
          %p212 = pneg %p124
        $region14: #{tpu_custom_call.1} parent=11 // pred_check_branch
          %214 = sbr.rel (%p212) target = $region16
        $region15: #{tpu_custom_call.1} parent=11 // pred_region
          _
        $region16: #{tpu_custom_call.1} parent=11 // pred_fallthru
          _
        // Predicated region
        $region17: #{tpu_custom_call.1} parent=11 // pred_check
          %p215 = pneg %p145
        $region18: #{tpu_custom_call.1} parent=11 // pred_check_branch
          %217 = sbr.rel (%p215) target = $region20
        $region19: #{tpu_custom_call.1} parent=11 // pred_region
          _
        $region20: #{tpu_custom_call.1} parent=11 // pred_fallthru
          _
      $region12: #{tpu_custom_call.1} parent=5 // pred_fallthru
        _
      %p218 = scmp.lt.s32.totalorder %s25, 2
      // Predicated region
      $region21: #{tpu_custom_call.1} parent=5 // pred_check
        %p219 = pneg %p218
      $region22: #{tpu_custom_call.1} parent=5 // pred_check_branch
        %221 = sbr.rel (%p219) target = $region24
      $region23: #{tpu_custom_call.1} parent=5 // pred_region
        // Predicated region
        $region25: #{tpu_custom_call.1} parent=23 // pred_check
          %p222 = pneg %p45
        $region26: #{tpu_custom_call.1} parent=23 // pred_check_branch
          %224 = sbr.rel (%p222) target = $region28
        $region27: #{tpu_custom_call.1} parent=23 // pred_region
          %s225 = sand.u32 %s35, 1
          %s226 = scalar_lea.sflag [#allocation3], %s225
          %s227 = sand.u32 %s35, 1
          %s228 = smul.addr %s227, 256
          %s229 = scalar_lea.vmem [#allocation2], %s228
          %s230 = smul.u32 32, %s25
          %s232 = ssub.s32 4096, 4096
          %233 = vsyncadd %s226, %s232
          %s234 = smul.addr %s230, 2
          %s235 = smul.addr %s234, 64
          %s236 = scalar_lea.hbm %s0, %s235
          %s237 = sshll.u32 %s229, 4
          %s238 = int_to_ptr.vmem [resolvable:$true] %s237
          %243 = dma.hbm_to_vmem [thread:$0]  %s236, 4096, %s238, %s226, 64, 64, 4
        $region28: #{tpu_custom_call.1} parent=23 // pred_fallthru
          _
        // Predicated region
        $region29: #{tpu_custom_call.1} parent=23 // pred_check
          %p244 = pneg %p71
        $region30: #{tpu_custom_call.1} parent=23 // pred_check_branch
          %246 = sbr.rel (%p244) target = $region32
        $region31: #{tpu_custom_call.1} parent=23 // pred_region
          %s247 = smul.u32 4, %s25
          %p248 = scmp.lt.s32.totalorder %s247, 7
          %s249 = scalar_select %p248, %s247, 7
          %s250 = smul.addr %s249, 8
          %s251 = scalar_lea.vmem %s1, %s250
          %s252 = smul.u32 4, %s25
        $region32: #{tpu_custom_call.1} parent=23 // pred_fallthru
          _
        // Predicated region
        $region33: #{tpu_custom_call.1} parent=23 // pred_check
          %p253 = pneg %p97
        $region34: #{tpu_custom_call.1} parent=23 // pred_check_branch
          %255 = sbr.rel (%p253) target = $region36
        $region35: #{tpu_custom_call.1} parent=23 // pred_region
          %s256 = sand.u32 %s87, 1
          %s257 = scalar_lea.sflag [#allocation6], %s256
          %s258 = sand.u32 %s87, 1
          %s259 = smul.addr %s258, 16
          %s260 = scalar_lea.vmem [#allocation5], %s259
          %s261 = smul.u32 4, %s25
          %s263 = ssub.s32 256, 256
          %264 = vsyncadd %s257, %s263
          %s265 = smul.addr %s261, 64
          %s266 = scalar_lea.hbm %s2, %s265
          %s267 = sshll.u32 %s260, 4
          %s268 = int_to_ptr.vmem [resolvable:$true] %s267
          %273 = dma.hbm_to_vmem [thread:$0]  %s266, 256, %s268, %s257, 64, 64, 4
        $region36: #{tpu_custom_call.1} parent=23 // pred_fallthru
          _
      $region24: #{tpu_custom_call.1} parent=5 // pred_fallthru
        _
      %p274 = scmp.le.s32.totalorder 1, %s25
      %p275 = scmp.lt.s32.totalorder %s25, 3
      %p276 = pnand %p274, %p275
      %p277 = pneg %p276
      // Predicated region
      $region37: #{tpu_custom_call.1} parent=5 // pred_check
        _
      $region38: #{tpu_custom_call.1} parent=5 // pred_check_branch
        %279 = sbr.rel (%p276) target = $region40
      $region39: #{tpu_custom_call.1} parent=5 // pred_region
        %s280 = ssub.s32 %s25, 1
        %s281 = sand.u32 %s38, 1
        %s282 = scalar_lea.sflag [#allocation3], %s281
        %s283 = sand.u32 %s38, 1
        %s284 = smul.addr %s283, 256
        %s285 = scalar_lea.vmem [#allocation2], %s284
        // Predicated region
        $region41: #{tpu_custom_call.1} parent=39 // pred_check
          %p286 = pneg %p51
        $region42: #{tpu_custom_call.1} parent=39 // pred_check_branch
          %288 = sbr.rel (%p286) target = $region44
        $region43: #{tpu_custom_call.1} parent=39 // pred_region
          %289 = dma.done %s282, 4096
        $region44: #{tpu_custom_call.1} parent=39 // pred_fallthru
          _
        %s290 = sand.u32 %s90, 1
        %s291 = scalar_lea.sflag [#allocation6], %s290
        %s292 = sand.u32 %s90, 1
        %s293 = smul.addr %s292, 16
        %s294 = scalar_lea.vmem [#allocation5], %s293
        // Predicated region
        $region45: #{tpu_custom_call.1} parent=39 // pred_check
          %p295 = pneg %p103
        $region46: #{tpu_custom_call.1} parent=39 // pred_check_branch
          %297 = sbr.rel (%p295) target = $region48
        $region47: #{tpu_custom_call.1} parent=39 // pred_region
          %298 = dma.done %s291, 256
        $region48: #{tpu_custom_call.1} parent=39 // pred_fallthru
          _
        %s299 = sand.u32 %s38, 1
        %s300 = scalar_lea.sflag [#allocation3], %s299
        %s301 = sand.u32 %s38, 1
        %s302 = smul.addr %s301, 256
        %s303 = scalar_lea.vmem [#allocation2], %s302
        %p304 = pneg %p51
        %p305 = pneg %p48
        %s306 = smul.u32 4, %s30
        %p307 = scmp.lt.s32.totalorder %s306, 7
        %s308 = scalar_select %p307, %s306, 7
        %s309 = smul.addr %s308, 8
        %s310 = scalar_lea.vmem %s1, %s309
        %p311 = pneg %p77
        %p312 = pneg %p74
        %s313 = sand.u32 %s90, 1
        %s314 = scalar_lea.sflag [#allocation6], %s313
        %s315 = sand.u32 %s90, 1
        %s316 = smul.addr %s315, 16
        %s317 = scalar_lea.vmem [#allocation5], %s316
        %p318 = pneg %p103
        %p319 = pneg %p100
        %p320 = pneg %p124
        %p321 = pneg %p121
        %p322 = pneg %p145
        %p323 = pneg %p142
        %p324 = pneg %p171
        %p325 = pneg %p168
        %s326 = sand.u32 %s158, 1
        %s327 = scalar_lea.sflag [#allocation4], %s326
        %s328 = sand.u32 %s158, 1
        %s329 = smul.addr %s328, 16
        %s330 = scalar_lea.vmem [#allocation7], %s329
        %p331 = pneg %p197
        %p332 = pneg %p194
        %s333 = sand.u32 %s184, 1
        %s334 = scalar_lea.sflag [#allocation9], %s333
        %s335 = sand.u32 %s184, 1
        %s336 = smul.addr %s335, 16
        %s337 = scalar_lea.vmem [#allocation8], %s336
        %s338 = smul.u32 32, %s30
        %s339 = smul.u32 4, %s30
        %p340 = scmp.lt.s32.totalorder %s339, 7
        %s341 = scalar_select %p340, %s339, 7
        %s342 = smul.addr %s341, 8
        %s343 = scalar_lea.vmem %s1, %s342
        %s344 = smul.u32 4, %s30
        %s345 = smul.u32 4, %s30
        %s346 = smul.u32 4, %s30
        %s347 = smul.u32 4, %s30
        %v349 = vld [vmem:[%s343] sm:$0xff]
        %v350 = vld [vmem:[%s343 + $0x8] sm:$0xff]
        %v351 = vld [vmem:[%s343 + $0x10] sm:$0xff]
        %v352 = vld [vmem:[%s343 + $0x18] sm:$0xff]
        %v353 = vld [vmem:[%s285] sm:$0xf]
        %v354 = vld [vmem:[%s285 + $0x4] sm:$0xf]
        %v355 = vld [vmem:[%s285 + $0x8] sm:$0xf]
        %v356 = vld [vmem:[%s285 + $0xc] sm:$0xf]
        %v357 = vld [vmem:[%s285 + $0x10] sm:$0xf]
        %v358 = vld [vmem:[%s285 + $0x14] sm:$0xf]
        %v359 = vld [vmem:[%s285 + $0x18] sm:$0xf]
        %v360 = vld [vmem:[%s285 + $0x1c] sm:$0xf]
        %v361 = vld [vmem:[%s285 + $0x20] sm:$0xf]
        %v362 = vld [vmem:[%s285 + $0x24] sm:$0xf]
        %v363 = vld [vmem:[%s285 + $0x28] sm:$0xf]
        %v364 = vld [vmem:[%s285 + $0x2c] sm:$0xf]
        %v365 = vld [vmem:[%s285 + $0x30] sm:$0xf]
        %v366 = vld [vmem:[%s285 + $0x34] sm:$0xf]
        %v367 = vld [vmem:[%s285 + $0x38] sm:$0xf]
        %v368 = vld [vmem:[%s285 + $0x3c] sm:$0xf]
        %v369 = vld [vmem:[%s285 + $0x40] sm:$0xf]
        %v370 = vld [vmem:[%s285 + $0x44] sm:$0xf]
        %v371 = vld [vmem:[%s285 + $0x48] sm:$0xf]
        %v372 = vld [vmem:[%s285 + $0x4c] sm:$0xf]
        %v373 = vld [vmem:[%s285 + $0x50] sm:$0xf]
        %v374 = vld [vmem:[%s285 + $0x54] sm:$0xf]
        %v375 = vld [vmem:[%s285 + $0x58] sm:$0xf]
        %v376 = vld [vmem:[%s285 + $0x5c] sm:$0xf]
        %v377 = vld [vmem:[%s285 + $0x60] sm:$0xf]
        %v378 = vld [vmem:[%s285 + $0x64] sm:$0xf]
        %v379 = vld [vmem:[%s285 + $0x68] sm:$0xf]
        %v380 = vld [vmem:[%s285 + $0x6c] sm:$0xf]
        %v381 = vld [vmem:[%s285 + $0x70] sm:$0xf]
        %v382 = vld [vmem:[%s285 + $0x74] sm:$0xf]
        %v383 = vld [vmem:[%s285 + $0x78] sm:$0xf]
        %v384 = vld [vmem:[%s285 + $0x7c] sm:$0xf]
        %v385 = vld [vmem:[%s285 + $0x80] sm:$0xf]
        %v386 = vld [vmem:[%s285 + $0x84] sm:$0xf]
        %v387 = vld [vmem:[%s285 + $0x88] sm:$0xf]
        %v388 = vld [vmem:[%s285 + $0x8c] sm:$0xf]
        %v389 = vld [vmem:[%s285 + $0x90] sm:$0xf]
        %v390 = vld [vmem:[%s285 + $0x94] sm:$0xf]
        %v391 = vld [vmem:[%s285 + $0x98] sm:$0xf]
        %v392 = vld [vmem:[%s285 + $0x9c] sm:$0xf]
        %v393 = vld [vmem:[%s285 + $0xa0] sm:$0xf]
        %v394 = vld [vmem:[%s285 + $0xa4] sm:$0xf]
        %v395 = vld [vmem:[%s285 + $0xa8] sm:$0xf]
        %v396 = vld [vmem:[%s285 + $0xac] sm:$0xf]
        %v397 = vld [vmem:[%s285 + $0xb0] sm:$0xf]
        %v398 = vld [vmem:[%s285 + $0xb4] sm:$0xf]
        %v399 = vld [vmem:[%s285 + $0xb8] sm:$0xf]
        %v400 = vld [vmem:[%s285 + $0xbc] sm:$0xf]
        %v401 = vld [vmem:[%s285 + $0xc0] sm:$0xf]
        %v402 = vld [vmem:[%s285 + $0xc4] sm:$0xf]
        %v403 = vld [vmem:[%s285 + $0xc8] sm:$0xf]
        %v404 = vld [vmem:[%s285 + $0xcc] sm:$0xf]
        %v405 = vld [vmem:[%s285 + $0xd0] sm:$0xf]
        %v406 = vld [vmem:[%s285 + $0xd4] sm:$0xf]
        %v407 = vld [vmem:[%s285 + $0xd8] sm:$0xf]
        %v408 = vld [vmem:[%s285 + $0xdc] sm:$0xf]
        %v409 = vld [vmem:[%s285 + $0xe0] sm:$0xf]
        %v410 = vld [vmem:[%s285 + $0xe4] sm:$0xf]
        %v411 = vld [vmem:[%s285 + $0xe8] sm:$0xf]
        %v412 = vld [vmem:[%s285 + $0xec] sm:$0xf]
        %v413 = vld [vmem:[%s285 + $0xf0] sm:$0xf]
        %v414 = vld [vmem:[%s285 + $0xf4] sm:$0xf]
        %v415 = vld [vmem:[%s285 + $0xf8] sm:$0xf]
        %v416 = vld [vmem:[%s285 + $0xfc] sm:$0xf]
        %v417 = vunpack.c.l.bf16 %v353
        %v418 = vunpack.c.l.bf16 %v354
        %v419 = vunpack.c.l.bf16 %v355
        %v420 = vunpack.c.l.bf16 %v356
        %v421 = vunpack.c.l.bf16 %v357
        %v422 = vunpack.c.l.bf16 %v358
        %v423 = vunpack.c.l.bf16 %v359
        %v424 = vunpack.c.l.bf16 %v360
        %v425 = vunpack.c.l.bf16 %v361
        %v426 = vunpack.c.l.bf16 %v362
        %v427 = vunpack.c.l.bf16 %v363
        %v428 = vunpack.c.l.bf16 %v364
        %v429 = vunpack.c.l.bf16 %v365
        %v430 = vunpack.c.l.bf16 %v366
        %v431 = vunpack.c.l.bf16 %v367
        %v432 = vunpack.c.l.bf16 %v368
        %v433 = vunpack.c.l.bf16 %v369
        %v434 = vunpack.c.l.bf16 %v370
        %v435 = vunpack.c.l.bf16 %v371
        %v436 = vunpack.c.l.bf16 %v372
        %v437 = vunpack.c.l.bf16 %v373
        %v438 = vunpack.c.l.bf16 %v374
        %v439 = vunpack.c.l.bf16 %v375
        %v440 = vunpack.c.l.bf16 %v376
        %v441 = vunpack.c.l.bf16 %v377
        %v442 = vunpack.c.l.bf16 %v378
        %v443 = vunpack.c.l.bf16 %v379
        %v444 = vunpack.c.l.bf16 %v380
        %v445 = vunpack.c.l.bf16 %v381
        %v446 = vunpack.c.l.bf16 %v382
        %v447 = vunpack.c.l.bf16 %v383
        %v448 = vunpack.c.l.bf16 %v384
        %v449 = vunpack.c.l.bf16 %v385
        %v450 = vunpack.c.l.bf16 %v386
        %v451 = vunpack.c.l.bf16 %v387
        %v452 = vunpack.c.l.bf16 %v388
        %v453 = vunpack.c.l.bf16 %v389
        %v454 = vunpack.c.l.bf16 %v390
        %v455 = vunpack.c.l.bf16 %v391
        %v456 = vunpack.c.l.bf16 %v392
        %v457 = vunpack.c.l.bf16 %v393
        %v458 = vunpack.c.l.bf16 %v394
        %v459 = vunpack.c.l.bf16 %v395
        %v460 = vunpack.c.l.bf16 %v396
        %v461 = vunpack.c.l.bf16 %v397
        %v462 = vunpack.c.l.bf16 %v398
        %v463 = vunpack.c.l.bf16 %v399
        %v464 = vunpack.c.l.bf16 %v400
        %v465 = vunpack.c.l.bf16 %v401
        %v466 = vunpack.c.l.bf16 %v402
        %v467 = vunpack.c.l.bf16 %v403
        %v468 = vunpack.c.l.bf16 %v404
        %v469 = vunpack.c.l.bf16 %v405
        %v470 = vunpack.c.l.bf16 %v406
        %v471 = vunpack.c.l.bf16 %v407
        %v472 = vunpack.c.l.bf16 %v408
        %v473 = vunpack.c.l.bf16 %v409
        %v474 = vunpack.c.l.bf16 %v410
        %v475 = vunpack.c.l.bf16 %v411
        %v476 = vunpack.c.l.bf16 %v412
        %v477 = vunpack.c.l.bf16 %v413
        %v478 = vunpack.c.l.bf16 %v414
        %v479 = vunpack.c.l.bf16 %v415
        %v480 = vunpack.c.l.bf16 %v416
        %v481 = vlaneseq
        %v482 = vshrl.u32 %v481, 7
        %v483 = vsub.s32 0, %v482
        %v484 = vrot.slane %v349, %v483
        %486 = vbcast.lane.b32.xlu0 %v484, 256
        %v487 = vpop.permute.xlu0 %486
        %s489 = sor.u32 256, 8
        %490 = vbcast.lane.b32.xlu0 %v484, %s489
        %v491 = vpop.permute.xlu0 %490
        %v492 = vlaneseq
        %v493 = vshrl.u32 %v492, 7
        %v494 = vsub.s32 1, %v493
        %v495 = vrot.slane %v349, %v494
        %497 = vbcast.lane.b32.xlu0 %v495, 256
        %v498 = vpop.permute.xlu0 %497
        %s500 = sor.u32 256, 8
        %501 = vbcast.lane.b32.xlu0 %v495, %s500
        %v502 = vpop.permute.xlu0 %501
        %v503 = vlaneseq
        %v504 = vshrl.u32 %v503, 7
        %v505 = vsub.s32 2, %v504
        %v506 = vrot.slane %v349, %v505
        %508 = vbcast.lane.b32.xlu0 %v506, 256
        %v509 = vpop.permute.xlu0 %508
        %s511 = sor.u32 256, 8
        %512 = vbcast.lane.b32.xlu0 %v506, %s511
        %v513 = vpop.permute.xlu0 %512
        %v514 = vlaneseq
        %v515 = vshrl.u32 %v514, 7
        %v516 = vsub.s32 3, %v515
        %v517 = vrot.slane %v349, %v516
        %519 = vbcast.lane.b32.xlu0 %v517, 256
        %v520 = vpop.permute.xlu0 %519
        %s522 = sor.u32 256, 8
        %523 = vbcast.lane.b32.xlu0 %v517, %s522
        %v524 = vpop.permute.xlu0 %523
        %v525 = vlaneseq
        %v526 = vshrl.u32 %v525, 7
        %v527 = vsub.s32 4, %v526
        %v528 = vrot.slane %v349, %v527
        %530 = vbcast.lane.b32.xlu0 %v528, 256
        %v531 = vpop.permute.xlu0 %530
        %s533 = sor.u32 256, 8
        %534 = vbcast.lane.b32.xlu0 %v528, %s533
        %v535 = vpop.permute.xlu0 %534
        %v536 = vlaneseq
        %v537 = vshrl.u32 %v536, 7
        %v538 = vsub.s32 5, %v537
        %v539 = vrot.slane %v349, %v538
        %541 = vbcast.lane.b32.xlu0 %v539, 256
        %v542 = vpop.permute.xlu0 %541
        %s544 = sor.u32 256, 8
        %545 = vbcast.lane.b32.xlu0 %v539, %s544
        %v546 = vpop.permute.xlu0 %545
        %v547 = vlaneseq
        %v548 = vshrl.u32 %v547, 7
        %v549 = vsub.s32 6, %v548
        %v550 = vrot.slane %v349, %v549
        %552 = vbcast.lane.b32.xlu0 %v550, 256
        %v553 = vpop.permute.xlu0 %552
        %s555 = sor.u32 256, 8
        %556 = vbcast.lane.b32.xlu0 %v550, %s555
        %v557 = vpop.permute.xlu0 %556
        %v558 = vlaneseq
        %v559 = vshrl.u32 %v558, 7
        %v560 = vsub.s32 7, %v559
        %v561 = vrot.slane %v349, %v560
        %563 = vbcast.lane.b32.xlu0 %v561, 256
        %v564 = vpop.permute.xlu0 %563
        %s566 = sor.u32 256, 8
        %567 = vbcast.lane.b32.xlu0 %v561, %s566
        %v568 = vpop.permute.xlu0 %567
        %v569 = vlaneseq
        %v570 = vshrl.u32 %v569, 7
        %v571 = vsub.s32 0, %v570
        %v572 = vrot.slane %v350, %v571
        %574 = vbcast.lane.b32.xlu0 %v572, 256
        %v575 = vpop.permute.xlu0 %574
        %s577 = sor.u32 256, 8
        %578 = vbcast.lane.b32.xlu0 %v572, %s577
        %v579 = vpop.permute.xlu0 %578
        %v580 = vlaneseq
        %v581 = vshrl.u32 %v580, 7
        %v582 = vsub.s32 1, %v581
        %v583 = vrot.slane %v350, %v582
        %585 = vbcast.lane.b32.xlu0 %v583, 256
        %v586 = vpop.permute.xlu0 %585
        %s588 = sor.u32 256, 8
        %589 = vbcast.lane.b32.xlu0 %v583, %s588
        %v590 = vpop.permute.xlu0 %589
        %v591 = vlaneseq
        %v592 = vshrl.u32 %v591, 7
        %v593 = vsub.s32 2, %v592
        %v594 = vrot.slane %v350, %v593
        %596 = vbcast.lane.b32.xlu0 %v594, 256
        %v597 = vpop.permute.xlu0 %596
        %s599 = sor.u32 256, 8
        %600 = vbcast.lane.b32.xlu0 %v594, %s599
        %v601 = vpop.permute.xlu0 %600
        %v602 = vlaneseq
        %v603 = vshrl.u32 %v602, 7
        %v604 = vsub.s32 3, %v603
        %v605 = vrot.slane %v350, %v604
        %607 = vbcast.lane.b32.xlu0 %v605, 256
        %v608 = vpop.permute.xlu0 %607
        %s610 = sor.u32 256, 8
        %611 = vbcast.lane.b32.xlu0 %v605, %s610
        %v612 = vpop.permute.xlu0 %611
        %v613 = vlaneseq
        %v614 = vshrl.u32 %v613, 7
        %v615 = vsub.s32 4, %v614
        %v616 = vrot.slane %v350, %v615
        %618 = vbcast.lane.b32.xlu0 %v616, 256
        %v619 = vpop.permute.xlu0 %618
        %s621 = sor.u32 256, 8
        %622 = vbcast.lane.b32.xlu0 %v616, %s621
        %v623 = vpop.permute.xlu0 %622
        %v624 = vlaneseq
        %v625 = vshrl.u32 %v624, 7
        %v626 = vsub.s32 5, %v625
        %v627 = vrot.slane %v350, %v626
        %629 = vbcast.lane.b32.xlu0 %v627, 256
        %v630 = vpop.permute.xlu0 %629
        %s632 = sor.u32 256, 8
        %633 = vbcast.lane.b32.xlu0 %v627, %s632
        %v634 = vpop.permute.xlu0 %633
        %v635 = vlaneseq
        %v636 = vshrl.u32 %v635, 7
        %v637 = vsub.s32 6, %v636
        %v638 = vrot.slane %v350, %v637
        %640 = vbcast.lane.b32.xlu0 %v638, 256
        %v641 = vpop.permute.xlu0 %640
        %s643 = sor.u32 256, 8
        %644 = vbcast.lane.b32.xlu0 %v638, %s643
        %v645 = vpop.permute.xlu0 %644
        %v646 = vlaneseq
        %v647 = vshrl.u32 %v646, 7
        %v648 = vsub.s32 7, %v647
        %v649 = vrot.slane %v350, %v648
        %651 = vbcast.lane.b32.xlu0 %v649, 256
        %v652 = vpop.permute.xlu0 %651
        %s654 = sor.u32 256, 8
        %655 = vbcast.lane.b32.xlu0 %v649, %s654
        %v656 = vpop.permute.xlu0 %655
        %v657 = vlaneseq
        %v658 = vshrl.u32 %v657, 7
        %v659 = vsub.s32 0, %v658
        %v660 = vrot.slane %v351, %v659
        %662 = vbcast.lane.b32.xlu0 %v660, 256
        %v663 = vpop.permute.xlu0 %662
        %s665 = sor.u32 256, 8
        %666 = vbcast.lane.b32.xlu0 %v660, %s665
        %v667 = vpop.permute.xlu0 %666
        %v668 = vlaneseq
        %v669 = vshrl.u32 %v668, 7
        %v670 = vsub.s32 1, %v669
        %v671 = vrot.slane %v351, %v670
        %673 = vbcast.lane.b32.xlu0 %v671, 256
        %v674 = vpop.permute.xlu0 %673
        %s676 = sor.u32 256, 8
        %677 = vbcast.lane.b32.xlu0 %v671, %s676
        %v678 = vpop.permute.xlu0 %677
        %v679 = vlaneseq
        %v680 = vshrl.u32 %v679, 7
        %v681 = vsub.s32 2, %v680
        %v682 = vrot.slane %v351, %v681
        %684 = vbcast.lane.b32.xlu0 %v682, 256
        %v685 = vpop.permute.xlu0 %684
        %s687 = sor.u32 256, 8
        %688 = vbcast.lane.b32.xlu0 %v682, %s687
        %v689 = vpop.permute.xlu0 %688
        %v690 = vlaneseq
        %v691 = vshrl.u32 %v690, 7
        %v692 = vsub.s32 3, %v691
        %v693 = vrot.slane %v351, %v692
        %695 = vbcast.lane.b32.xlu0 %v693, 256
        %v696 = vpop.permute.xlu0 %695
        %s698 = sor.u32 256, 8
        %699 = vbcast.lane.b32.xlu0 %v693, %s698
        %v700 = vpop.permute.xlu0 %699
        %v701 = vlaneseq
        %v702 = vshrl.u32 %v701, 7
        %v703 = vsub.s32 4, %v702
        %v704 = vrot.slane %v351, %v703
        %706 = vbcast.lane.b32.xlu0 %v704, 256
        %v707 = vpop.permute.xlu0 %706
        %s709 = sor.u32 256, 8
        %710 = vbcast.lane.b32.xlu0 %v704, %s709
        %v711 = vpop.permute.xlu0 %710
        %v712 = vlaneseq
        %v713 = vshrl.u32 %v712, 7
        %v714 = vsub.s32 5, %v713
        %v715 = vrot.slane %v351, %v714
        %717 = vbcast.lane.b32.xlu0 %v715, 256
        %v718 = vpop.permute.xlu0 %717
        %s720 = sor.u32 256, 8
        %721 = vbcast.lane.b32.xlu0 %v715, %s720
        %v722 = vpop.permute.xlu0 %721
        %v723 = vlaneseq
        %v724 = vshrl.u32 %v723, 7
        %v725 = vsub.s32 6, %v724
        %v726 = vrot.slane %v351, %v725
        %728 = vbcast.lane.b32.xlu0 %v726, 256
        %v729 = vpop.permute.xlu0 %728
        %s731 = sor.u32 256, 8
        %732 = vbcast.lane.b32.xlu0 %v726, %s731
        %v733 = vpop.permute.xlu0 %732
        %v734 = vlaneseq
        %v735 = vshrl.u32 %v734, 7
        %v736 = vsub.s32 7, %v735
        %v737 = vrot.slane %v351, %v736
        %739 = vbcast.lane.b32.xlu0 %v737, 256
        %v740 = vpop.permute.xlu0 %739
        %s742 = sor.u32 256, 8
        %743 = vbcast.lane.b32.xlu0 %v737, %s742
        %v744 = vpop.permute.xlu0 %743
        %v745 = vlaneseq
        %v746 = vshrl.u32 %v745, 7
        %v747 = vsub.s32 0, %v746
        %v748 = vrot.slane %v352, %v747
        %750 = vbcast.lane.b32.xlu0 %v748, 256
        %v751 = vpop.permute.xlu0 %750
        %s753 = sor.u32 256, 8
        %754 = vbcast.lane.b32.xlu0 %v748, %s753
        %v755 = vpop.permute.xlu0 %754
        %v756 = vlaneseq
        %v757 = vshrl.u32 %v756, 7
        %v758 = vsub.s32 1, %v757
        %v759 = vrot.slane %v352, %v758
        %761 = vbcast.lane.b32.xlu0 %v759, 256
        %v762 = vpop.permute.xlu0 %761
        %s764 = sor.u32 256, 8
        %765 = vbcast.lane.b32.xlu0 %v759, %s764
        %v766 = vpop.permute.xlu0 %765
        %v767 = vlaneseq
        %v768 = vshrl.u32 %v767, 7
        %v769 = vsub.s32 2, %v768
        %v770 = vrot.slane %v352, %v769
        %772 = vbcast.lane.b32.xlu0 %v770, 256
        %v773 = vpop.permute.xlu0 %772
        %s775 = sor.u32 256, 8
        %776 = vbcast.lane.b32.xlu0 %v770, %s775
        %v777 = vpop.permute.xlu0 %776
        %v778 = vlaneseq
        %v779 = vshrl.u32 %v778, 7
        %v780 = vsub.s32 3, %v779
        %v781 = vrot.slane %v352, %v780
        %783 = vbcast.lane.b32.xlu0 %v781, 256
        %v784 = vpop.permute.xlu0 %783
        %s786 = sor.u32 256, 8
        %787 = vbcast.lane.b32.xlu0 %v781, %s786
        %v788 = vpop.permute.xlu0 %787
        %v789 = vlaneseq
        %v790 = vshrl.u32 %v789, 7
        %v791 = vsub.s32 4, %v790
        %v792 = vrot.slane %v352, %v791
        %794 = vbcast.lane.b32.xlu0 %v792, 256
        %v795 = vpop.permute.xlu0 %794
        %s797 = sor.u32 256, 8
        %798 = vbcast.lane.b32.xlu0 %v792, %s797
        %v799 = vpop.permute.xlu0 %798
        %v800 = vlaneseq
        %v801 = vshrl.u32 %v800, 7
        %v802 = vsub.s32 5, %v801
        %v803 = vrot.slane %v352, %v802
        %805 = vbcast.lane.b32.xlu0 %v803, 256
        %v806 = vpop.permute.xlu0 %805
        %s808 = sor.u32 256, 8
        %809 = vbcast.lane.b32.xlu0 %v803, %s808
        %v810 = vpop.permute.xlu0 %809
        %v811 = vlaneseq
        %v812 = vshrl.u32 %v811, 7
        %v813 = vsub.s32 6, %v812
        %v814 = vrot.slane %v352, %v813
        %816 = vbcast.lane.b32.xlu0 %v814, 256
        %v817 = vpop.permute.xlu0 %816
        %s819 = sor.u32 256, 8
        %820 = vbcast.lane.b32.xlu0 %v814, %s819
        %v821 = vpop.permute.xlu0 %820
        %v822 = vlaneseq
        %v823 = vshrl.u32 %v822, 7
        %v824 = vsub.s32 7, %v823
        %v825 = vrot.slane %v352, %v824
        %827 = vbcast.lane.b32.xlu0 %v825, 256
        %v828 = vpop.permute.xlu0 %827
        %s830 = sor.u32 256, 8
        %831 = vbcast.lane.b32.xlu0 %v825, %s830
        %v832 = vpop.permute.xlu0 %831
        %v833 = vmul.f32 %v417, %v487
        %v834 = vmul.f32 %v418, %v491
        %v835 = vmul.f32 %v419, %v498
        %v836 = vmul.f32 %v420, %v502
        %v837 = vmul.f32 %v421, %v509
        %v838 = vmul.f32 %v422, %v513
        %v839 = vmul.f32 %v423, %v520
        %v840 = vmul.f32 %v424, %v524
        %v841 = vmul.f32 %v425, %v531
        %v842 = vmul.f32 %v426, %v535
        %v843 = vmul.f32 %v427, %v542
        %v844 = vmul.f32 %v428, %v546
        %v845 = vmul.f32 %v429, %v553
        %v846 = vmul.f32 %v430, %v557
        %v847 = vmul.f32 %v431, %v564
        %v848 = vmul.f32 %v432, %v568
        %v849 = vmul.f32 %v433, %v575
        %v850 = vmul.f32 %v434, %v579
        %v851 = vmul.f32 %v435, %v586
        %v852 = vmul.f32 %v436, %v590
        %v853 = vmul.f32 %v437, %v597
        %v854 = vmul.f32 %v438, %v601
        %v855 = vmul.f32 %v439, %v608
        %v856 = vmul.f32 %v440, %v612
        %v857 = vmul.f32 %v441, %v619
        %v858 = vmul.f32 %v442, %v623
        %v859 = vmul.f32 %v443, %v630
        %v860 = vmul.f32 %v444, %v634
        %v861 = vmul.f32 %v445, %v641
        %v862 = vmul.f32 %v446, %v645
        %v863 = vmul.f32 %v447, %v652
        %v864 = vmul.f32 %v448, %v656
        %v865 = vmul.f32 %v449, %v663
        %v866 = vmul.f32 %v450, %v667
        %v867 = vmul.f32 %v451, %v674
        %v868 = vmul.f32 %v452, %v678
        %v869 = vmul.f32 %v453, %v685
        %v870 = vmul.f32 %v454, %v689
        %v871 = vmul.f32 %v455, %v696
        %v872 = vmul.f32 %v456, %v700
        %v873 = vmul.f32 %v457, %v707
        %v874 = vmul.f32 %v458, %v711
        %v875 = vmul.f32 %v459, %v718
        %v876 = vmul.f32 %v460, %v722
        %v877 = vmul.f32 %v461, %v729
        %v878 = vmul.f32 %v462, %v733
        %v879 = vmul.f32 %v463, %v740
        %v880 = vmul.f32 %v464, %v744
        %v881 = vmul.f32 %v465, %v751
        %v882 = vmul.f32 %v466, %v755
        %v883 = vmul.f32 %v467, %v762
        %v884 = vmul.f32 %v468, %v766
        %v885 = vmul.f32 %v469, %v773
        %v886 = vmul.f32 %v470, %v777
        %v887 = vmul.f32 %v471, %v784
        %v888 = vmul.f32 %v472, %v788
        %v889 = vmul.f32 %v473, %v795
        %v890 = vmul.f32 %v474, %v799
        %v891 = vmul.f32 %v475, %v806
        %v892 = vmul.f32 %v476, %v810
        %v893 = vmul.f32 %v477, %v817
        %v894 = vmul.f32 %v478, %v821
        %v895 = vmul.f32 %v479, %v828
        %v896 = vmul.f32 %v480, %v832
        %v897 = vadd.f32 %v833, %v834
        %v898 = vrot.slane %v897, 4
        %v899 = vadd.f32 %v897, %v898
        %v900 = vrot.slane %v899, 2
        %v901 = vadd.f32 %v899, %v900
        %v902 = vrot.slane %v901, 1
        %v903 = vadd.f32 %v901, %v902
        %v904 = vadd.f32 %v835, %v836
        %v905 = vrot.slane %v904, 4
        %v906 = vadd.f32 %v904, %v905
        %v907 = vrot.slane %v906, 2
        %v908 = vadd.f32 %v906, %v907
        %v909 = vrot.slane %v908, 1
        %v910 = vadd.f32 %v908, %v909
        %v911 = vadd.f32 %v837, %v838
        %v912 = vrot.slane %v911, 4
        %v913 = vadd.f32 %v911, %v912
        %v914 = vrot.slane %v913, 2
        %v915 = vadd.f32 %v913, %v914
        %v916 = vrot.slane %v915, 1
        %v917 = vadd.f32 %v915, %v916
        %v918 = vadd.f32 %v839, %v840
        %v919 = vrot.slane %v918, 4
        %v920 = vadd.f32 %v918, %v919
        %v921 = vrot.slane %v920, 2
        %v922 = vadd.f32 %v920, %v921
        %v923 = vrot.slane %v922, 1
        %v924 = vadd.f32 %v922, %v923
        %v925 = vadd.f32 %v841, %v842
        %v926 = vrot.slane %v925, 4
        %v927 = vadd.f32 %v925, %v926
        %v928 = vrot.slane %v927, 2
        %v929 = vadd.f32 %v927, %v928
        %v930 = vrot.slane %v929, 1
        %v931 = vadd.f32 %v929, %v930
        %v932 = vadd.f32 %v843, %v844
        %v933 = vrot.slane %v932, 4
        %v934 = vadd.f32 %v932, %v933
        %v935 = vrot.slane %v934, 2
        %v936 = vadd.f32 %v934, %v935
        %v937 = vrot.slane %v936, 1
        %v938 = vadd.f32 %v936, %v937
        %v939 = vadd.f32 %v845, %v846
        %v940 = vrot.slane %v939, 4
        %v941 = vadd.f32 %v939, %v940
        %v942 = vrot.slane %v941, 2
        %v943 = vadd.f32 %v941, %v942
        %v944 = vrot.slane %v943, 1
        %v945 = vadd.f32 %v943, %v944
        %v946 = vadd.f32 %v847, %v848
        %v947 = vrot.slane %v946, 4
        %v948 = vadd.f32 %v946, %v947
        %v949 = vrot.slane %v948, 2
        %v950 = vadd.f32 %v948, %v949
        %v951 = vrot.slane %v950, 1
        %v952 = vadd.f32 %v950, %v951
        %v953 = vadd.f32 %v849, %v850
        %v954 = vrot.slane %v953, 4
        %v955 = vadd.f32 %v953, %v954
        %v956 = vrot.slane %v955, 2
        %v957 = vadd.f32 %v955, %v956
        %v958 = vrot.slane %v957, 1
        %v959 = vadd.f32 %v957, %v958
        %v960 = vadd.f32 %v851, %v852
        %v961 = vrot.slane %v960, 4
        %v962 = vadd.f32 %v960, %v961
        %v963 = vrot.slane %v962, 2
        %v964 = vadd.f32 %v962, %v963
        %v965 = vrot.slane %v964, 1
        %v966 = vadd.f32 %v964, %v965
        %v967 = vadd.f32 %v853, %v854
        %v968 = vrot.slane %v967, 4
        %v969 = vadd.f32 %v967, %v968
        %v970 = vrot.slane %v969, 2
        %v971 = vadd.f32 %v969, %v970
        %v972 = vrot.slane %v971, 1
        %v973 = vadd.f32 %v971, %v972
        %v974 = vadd.f32 %v855, %v856
        %v975 = vrot.slane %v974, 4
        %v976 = vadd.f32 %v974, %v975
        %v977 = vrot.slane %v976, 2
        %v978 = vadd.f32 %v976, %v977
        %v979 = vrot.slane %v978, 1
        %v980 = vadd.f32 %v978, %v979
        %v981 = vadd.f32 %v857, %v858
        %v982 = vrot.slane %v981, 4
        %v983 = vadd.f32 %v981, %v982
        %v984 = vrot.slane %v983, 2
        %v985 = vadd.f32 %v983, %v984
        %v986 = vrot.slane %v985, 1
        %v987 = vadd.f32 %v985, %v986
        %v988 = vadd.f32 %v859, %v860
        %v989 = vrot.slane %v988, 4
        %v990 = vadd.f32 %v988, %v989
        %v991 = vrot.slane %v990, 2
        %v992 = vadd.f32 %v990, %v991
        %v993 = vrot.slane %v992, 1
        %v994 = vadd.f32 %v992, %v993
        %v995 = vadd.f32 %v861, %v862
        %v996 = vrot.slane %v995, 4
        %v997 = vadd.f32 %v995, %v996
        %v998 = vrot.slane %v997, 2
        %v999 = vadd.f32 %v997, %v998
        %v1000 = vrot.slane %v999, 1
        %v1001 = vadd.f32 %v999, %v1000
        %v1002 = vadd.f32 %v863, %v864
        %v1003 = vrot.slane %v1002, 4
        %v1004 = vadd.f32 %v1002, %v1003
        %v1005 = vrot.slane %v1004, 2
        %v1006 = vadd.f32 %v1004, %v1005
        %v1007 = vrot.slane %v1006, 1
        %v1008 = vadd.f32 %v1006, %v1007
        %v1009 = vadd.f32 %v865, %v866
        %v1010 = vrot.slane %v1009, 4
        %v1011 = vadd.f32 %v1009, %v1010
        %v1012 = vrot.slane %v1011, 2
        %v1013 = vadd.f32 %v1011, %v1012
        %v1014 = vrot.slane %v1013, 1
        %v1015 = vadd.f32 %v1013, %v1014
        %v1016 = vadd.f32 %v867, %v868
        %v1017 = vrot.slane %v1016, 4
        %v1018 = vadd.f32 %v1016, %v1017
        %v1019 = vrot.slane %v1018, 2
        %v1020 = vadd.f32 %v1018, %v1019
        %v1021 = vrot.slane %v1020, 1
        %v1022 = vadd.f32 %v1020, %v1021
        %v1023 = vadd.f32 %v869, %v870
        %v1024 = vrot.slane %v1023, 4
        %v1025 = vadd.f32 %v1023, %v1024
        %v1026 = vrot.slane %v1025, 2
        %v1027 = vadd.f32 %v1025, %v1026
        %v1028 = vrot.slane %v1027, 1
        %v1029 = vadd.f32 %v1027, %v1028
        %v1030 = vadd.f32 %v871, %v872
        %v1031 = vrot.slane %v1030, 4
        %v1032 = vadd.f32 %v1030, %v1031
        %v1033 = vrot.slane %v1032, 2
        %v1034 = vadd.f32 %v1032, %v1033
        %v1035 = vrot.slane %v1034, 1
        %v1036 = vadd.f32 %v1034, %v1035
        %v1037 = vadd.f32 %v873, %v874
        %v1038 = vrot.slane %v1037, 4
        %v1039 = vadd.f32 %v1037, %v1038
        %v1040 = vrot.slane %v1039, 2
        %v1041 = vadd.f32 %v1039, %v1040
        %v1042 = vrot.slane %v1041, 1
        %v1043 = vadd.f32 %v1041, %v1042
        %v1044 = vadd.f32 %v875, %v876
        %v1045 = vrot.slane %v1044, 4
        %v1046 = vadd.f32 %v1044, %v1045
        %v1047 = vrot.slane %v1046, 2
        %v1048 = vadd.f32 %v1046, %v1047
        %v1049 = vrot.slane %v1048, 1
        %v1050 = vadd.f32 %v1048, %v1049
        %v1051 = vadd.f32 %v877, %v878
        %v1052 = vrot.slane %v1051, 4
        %v1053 = vadd.f32 %v1051, %v1052
        %v1054 = vrot.slane %v1053, 2
        %v1055 = vadd.f32 %v1053, %v1054
        %v1056 = vrot.slane %v1055, 1
        %v1057 = vadd.f32 %v1055, %v1056
        %v1058 = vadd.f32 %v879, %v880
        %v1059 = vrot.slane %v1058, 4
        %v1060 = vadd.f32 %v1058, %v1059
        %v1061 = vrot.slane %v1060, 2
        %v1062 = vadd.f32 %v1060, %v1061
        %v1063 = vrot.slane %v1062, 1
        %v1064 = vadd.f32 %v1062, %v1063
        %v1065 = vadd.f32 %v881, %v882
        %v1066 = vrot.slane %v1065, 4
        %v1067 = vadd.f32 %v1065, %v1066
        %v1068 = vrot.slane %v1067, 2
        %v1069 = vadd.f32 %v1067, %v1068
        %v1070 = vrot.slane %v1069, 1
        %v1071 = vadd.f32 %v1069, %v1070
        %v1072 = vadd.f32 %v883, %v884
        %v1073 = vrot.slane %v1072, 4
        %v1074 = vadd.f32 %v1072, %v1073
        %v1075 = vrot.slane %v1074, 2
        %v1076 = vadd.f32 %v1074, %v1075
        %v1077 = vrot.slane %v1076, 1
        %v1078 = vadd.f32 %v1076, %v1077
        %v1079 = vadd.f32 %v885, %v886
        %v1080 = vrot.slane %v1079, 4
        %v1081 = vadd.f32 %v1079, %v1080
        %v1082 = vrot.slane %v1081, 2
        %v1083 = vadd.f32 %v1081, %v1082
        %v1084 = vrot.slane %v1083, 1
        %v1085 = vadd.f32 %v1083, %v1084
        %v1086 = vadd.f32 %v887, %v888
        %v1087 = vrot.slane %v1086, 4
        %v1088 = vadd.f32 %v1086, %v1087
        %v1089 = vrot.slane %v1088, 2
        %v1090 = vadd.f32 %v1088, %v1089
        %v1091 = vrot.slane %v1090, 1
        %v1092 = vadd.f32 %v1090, %v1091
        %v1093 = vadd.f32 %v889, %v890
        %v1094 = vrot.slane %v1093, 4
        %v1095 = vadd.f32 %v1093, %v1094
        %v1096 = vrot.slane %v1095, 2
        %v1097 = vadd.f32 %v1095, %v1096
        %v1098 = vrot.slane %v1097, 1
        %v1099 = vadd.f32 %v1097, %v1098
        %v1100 = vadd.f32 %v891, %v892
        %v1101 = vrot.slane %v1100, 4
        %v1102 = vadd.f32 %v1100, %v1101
        %v1103 = vrot.slane %v1102, 2
        %v1104 = vadd.f32 %v1102, %v1103
        %v1105 = vrot.slane %v1104, 1
        %v1106 = vadd.f32 %v1104, %v1105
        %v1107 = vadd.f32 %v893, %v894
        %v1108 = vrot.slane %v1107, 4
        %v1109 = vadd.f32 %v1107, %v1108
        %v1110 = vrot.slane %v1109, 2
        %v1111 = vadd.f32 %v1109, %v1110
        %v1112 = vrot.slane %v1111, 1
        %v1113 = vadd.f32 %v1111, %v1112
        %v1114 = vadd.f32 %v895, %v896
        %v1115 = vrot.slane %v1114, 4
        %v1116 = vadd.f32 %v1114, %v1115
        %v1117 = vrot.slane %v1116, 2
        %v1118 = vadd.f32 %v1116, %v1117
        %v1119 = vrot.slane %v1118, 1
        %v1120 = vadd.f32 %v1118, %v1119
        %vm1121 = vcmask 130048
        %v1122 = vsel %vm1121, %v349, 0.0
        %1123 = vadd.xlane.f32.xlu0 %v1122
        %v1124 = vpop.xlane.xlu0 %1123
        %v1125 = vsel %vm1121, %v350, 0.0
        %1126 = vadd.xlane.f32.xlu0 %v1125
        %v1127 = vpop.xlane.xlu0 %1126
        %v1128 = vsel %vm1121, %v351, 0.0
        %1129 = vadd.xlane.f32.xlu0 %v1128
        %v1130 = vpop.xlane.xlu0 %1129
        %v1131 = vsel %vm1121, %v352, 0.0
        %1132 = vadd.xlane.f32.xlu0 %v1131
        %v1133 = vpop.xlane.xlu0 %1132
        %v1134 = vmax.f32 %v1124, 1e-09
        %v1135 = vmax.f32 %v1127, 1e-09
        %v1136 = vmax.f32 %v1130, 1e-09
        %v1137 = vmax.f32 %v1133, 1e-09
        %v1138 = vrcp.pop %v1134
        %v1139 = vrcp.pop %v1135
        %v1140 = vrcp.pop %v1136
        %v1141 = vrcp.pop %v1137
        %v1146 = vrot.slane %v1138, 1
        %v1147 = vrot.slane %v1138, 2
        %v1148 = vrot.slane %v1138, 3
        %v1149 = vrot.slane %v1138, 4
        %v1150 = vrot.slane %v1138, 5
        %v1151 = vrot.slane %v1138, 6
        %v1152 = vrot.slane %v1138, 7
        %v1153 = vrot.slane %v1139, 1
        %v1154 = vrot.slane %v1139, 2
        %v1155 = vrot.slane %v1139, 3
        %v1156 = vrot.slane %v1139, 4
        %v1157 = vrot.slane %v1139, 5
        %v1158 = vrot.slane %v1139, 6
        %v1159 = vrot.slane %v1139, 7
        %v1160 = vrot.slane %v1140, 1
        %v1161 = vrot.slane %v1140, 2
        %v1162 = vrot.slane %v1140, 3
        %v1163 = vrot.slane %v1140, 4
        %v1164 = vrot.slane %v1140, 5
        %v1165 = vrot.slane %v1140, 6
        %v1166 = vrot.slane %v1140, 7
        %v1167 = vrot.slane %v1141, 1
        %v1168 = vrot.slane %v1141, 2
        %v1169 = vrot.slane %v1141, 3
        %v1170 = vrot.slane %v1141, 4
        %v1171 = vrot.slane %v1141, 5
        %v1172 = vrot.slane %v1141, 6
        %v1173 = vrot.slane %v1141, 7
        %v1206 = vmul.f32 %v903, %v1138
        %v1207 = vmul.f32 %v910, %v1146
        %v1208 = vmul.f32 %v917, %v1147
        %v1209 = vmul.f32 %v924, %v1148
        %v1210 = vmul.f32 %v931, %v1149
        %v1211 = vmul.f32 %v938, %v1150
        %v1212 = vmul.f32 %v945, %v1151
        %v1213 = vmul.f32 %v952, %v1152
        %v1214 = vmul.f32 %v959, %v1139
        %v1215 = vmul.f32 %v966, %v1153
        %v1216 = vmul.f32 %v973, %v1154
        %v1217 = vmul.f32 %v980, %v1155
        %v1218 = vmul.f32 %v987, %v1156
        %v1219 = vmul.f32 %v994, %v1157
        %v1220 = vmul.f32 %v1001, %v1158
        %v1221 = vmul.f32 %v1008, %v1159
        %v1222 = vmul.f32 %v1015, %v1140
        %v1223 = vmul.f32 %v1022, %v1160
        %v1224 = vmul.f32 %v1029, %v1161
        %v1225 = vmul.f32 %v1036, %v1162
        %v1226 = vmul.f32 %v1043, %v1163
        %v1227 = vmul.f32 %v1050, %v1164
        %v1228 = vmul.f32 %v1057, %v1165
        %v1229 = vmul.f32 %v1064, %v1166
        %v1230 = vmul.f32 %v1071, %v1141
        %v1231 = vmul.f32 %v1078, %v1167
        %v1232 = vmul.f32 %v1085, %v1168
        %v1233 = vmul.f32 %v1092, %v1169
        %v1234 = vmul.f32 %v1099, %v1170
        %v1235 = vmul.f32 %v1106, %v1171
        %v1236 = vmul.f32 %v1113, %v1172
        %v1237 = vmul.f32 %v1120, %v1173
        %v1238 = vpack.c.bf16 %v1206, %v1206
        %v1239 = vpack.c.bf16 %v1207, %v1207
        %v1240 = vpack.c.bf16 %v1208, %v1208
        %v1241 = vpack.c.bf16 %v1209, %v1209
        %v1242 = vpack.c.bf16 %v1210, %v1210
        %v1243 = vpack.c.bf16 %v1211, %v1211
        %v1244 = vpack.c.bf16 %v1212, %v1212
        %v1245 = vpack.c.bf16 %v1213, %v1213
        %v1246 = vpack.c.bf16 %v1214, %v1214
        %v1247 = vpack.c.bf16 %v1215, %v1215
        %v1248 = vpack.c.bf16 %v1216, %v1216
        %v1249 = vpack.c.bf16 %v1217, %v1217
        %v1250 = vpack.c.bf16 %v1218, %v1218
        %v1251 = vpack.c.bf16 %v1219, %v1219
        %v1252 = vpack.c.bf16 %v1220, %v1220
        %v1253 = vpack.c.bf16 %v1221, %v1221
        %v1254 = vpack.c.bf16 %v1222, %v1222
        %v1255 = vpack.c.bf16 %v1223, %v1223
        %v1256 = vpack.c.bf16 %v1224, %v1224
        %v1257 = vpack.c.bf16 %v1225, %v1225
        %v1258 = vpack.c.bf16 %v1226, %v1226
        %v1259 = vpack.c.bf16 %v1227, %v1227
        %v1260 = vpack.c.bf16 %v1228, %v1228
        %v1261 = vpack.c.bf16 %v1229, %v1229
        %v1262 = vpack.c.bf16 %v1230, %v1230
        %v1263 = vpack.c.bf16 %v1231, %v1231
        %v1264 = vpack.c.bf16 %v1232, %v1232
        %v1265 = vpack.c.bf16 %v1233, %v1233
        %v1266 = vpack.c.bf16 %v1234, %v1234
        %v1267 = vpack.c.bf16 %v1235, %v1235
        %v1268 = vpack.c.bf16 %v1236, %v1236
        %v1269 = vpack.c.bf16 %v1237, %v1237
        %v1270 = vld [vmem:[%s3] sm:$0xf]
        %v1271 = vld [vmem:[%s3 + $0x4] sm:$0xf]
        %v1272 = vld [vmem:[%s3 + $0x8] sm:$0xf]
        %v1273 = vld [vmem:[%s3 + $0xc] sm:$0xf]
        %v1274 = vld [vmem:[%s3 + $0x10] sm:$0xf]
        %v1275 = vld [vmem:[%s3 + $0x14] sm:$0xf]
        %v1276 = vld [vmem:[%s3 + $0x18] sm:$0xf]
        %v1277 = vld [vmem:[%s3 + $0x1c] sm:$0xf]
        %v1278 = vld [vmem:[%s3 + $0x20] sm:$0xf]
        %v1279 = vld [vmem:[%s3 + $0x24] sm:$0xf]
        %v1280 = vld [vmem:[%s3 + $0x28] sm:$0xf]
        %v1281 = vld [vmem:[%s3 + $0x2c] sm:$0xf]
        %v1282 = vld [vmem:[%s3 + $0x30] sm:$0xf]
        %v1283 = vld [vmem:[%s3 + $0x34] sm:$0xf]
        %v1284 = vld [vmem:[%s3 + $0x38] sm:$0xf]
        %v1285 = vld [vmem:[%s3 + $0x3c] sm:$0xf]
        %v1286 = vld [vmem:[%s4] sm:$0x1]
        %v1288 = vlaneseq
        %v1289 = vshrl.u32 %v1288, 7
        %v1290 = vsub.s32 0, %v1289
        %v1291 = vrot.slane %v1286, %v1290
        %v1325 = vunpack.c.l.b16 %v1238
        %v1326 = vunpack.c.l.b16 %v1239
        %v1327 = vunpack.c.l.b16 %v1240
        %v1328 = vunpack.c.l.b16 %v1241
        %v1329 = vunpack.c.l.b16 %v1242
        %v1330 = vunpack.c.l.b16 %v1243
        %v1331 = vunpack.c.l.b16 %v1244
        %v1332 = vunpack.c.l.b16 %v1245
        %v1333 = vunpack.c.l.b16 %v1246
        %v1334 = vunpack.c.l.b16 %v1247
        %v1335 = vunpack.c.l.b16 %v1248
        %v1336 = vunpack.c.l.b16 %v1249
        %v1337 = vunpack.c.l.b16 %v1250
        %v1338 = vunpack.c.l.b16 %v1251
        %v1339 = vunpack.c.l.b16 %v1252
        %v1340 = vunpack.c.l.b16 %v1253
        %v1341 = vunpack.c.l.b16 %v1254
        %v1342 = vunpack.c.l.b16 %v1255
        %v1343 = vunpack.c.l.b16 %v1256
        %v1344 = vunpack.c.l.b16 %v1257
        %v1345 = vunpack.c.l.b16 %v1258
        %v1346 = vunpack.c.l.b16 %v1259
        %v1347 = vunpack.c.l.b16 %v1260
        %v1348 = vunpack.c.l.b16 %v1261
        %v1349 = vunpack.c.l.b16 %v1262
        %v1350 = vunpack.c.l.b16 %v1263
        %v1351 = vunpack.c.l.b16 %v1264
        %v1352 = vunpack.c.l.b16 %v1265
        %v1353 = vunpack.c.l.b16 %v1266
        %v1354 = vunpack.c.l.b16 %v1267
        %v1355 = vunpack.c.l.b16 %v1268
        %v1356 = vunpack.c.l.b16 %v1269
        %v1357 = vrot.slane %v1326, 7
        %vm1358 = vcmask 1041409
        %v1359 = vsel %vm1358, %v1357, %v1325
        %v1360 = vrot.slane %v1327, 6
        %vm1361 = vcmask 1042434
        %v1362 = vsel %vm1361, %v1360, %v1359
        %v1363 = vrot.slane %v1328, 5
        %vm1364 = vcmask 1043459
        %v1365 = vsel %vm1364, %v1363, %v1362
        %v1366 = vrot.slane %v1329, 4
        %vm1367 = vcmask 1044484
        %v1368 = vsel %vm1367, %v1366, %v1365
        %v1369 = vrot.slane %v1330, 3
        %vm1370 = vcmask 1045509
        %v1371 = vsel %vm1370, %v1369, %v1368
        %v1372 = vrot.slane %v1331, 2
        %vm1373 = vcmask 1046534
        %v1374 = vsel %vm1373, %v1372, %v1371
        %v1375 = vrot.slane %v1332, 1
        %vm1376 = vcmask 1047559
        %v1377 = vsel %vm1376, %v1375, %v1374
        %v1378 = vrot.slane %v1334, 7
        %v1379 = vsel %vm1358, %v1378, %v1333
        %v1380 = vrot.slane %v1335, 6
        %v1381 = vsel %vm1361, %v1380, %v1379
        %v1382 = vrot.slane %v1336, 5
        %v1383 = vsel %vm1364, %v1382, %v1381
        %v1384 = vrot.slane %v1337, 4
        %v1385 = vsel %vm1367, %v1384, %v1383
        %v1386 = vrot.slane %v1338, 3
        %v1387 = vsel %vm1370, %v1386, %v1385
        %v1388 = vrot.slane %v1339, 2
        %v1389 = vsel %vm1373, %v1388, %v1387
        %v1390 = vrot.slane %v1340, 1
        %v1391 = vsel %vm1376, %v1390, %v1389
        %v1392 = vrot.slane %v1342, 7
        %v1393 = vsel %vm1358, %v1392, %v1341
        %v1394 = vrot.slane %v1343, 6
        %v1395 = vsel %vm1361, %v1394, %v1393
        %v1396 = vrot.slane %v1344, 5
        %v1397 = vsel %vm1364, %v1396, %v1395
        %v1398 = vrot.slane %v1345, 4
        %v1399 = vsel %vm1367, %v1398, %v1397
        %v1400 = vrot.slane %v1346, 3
        %v1401 = vsel %vm1370, %v1400, %v1399
        %v1402 = vrot.slane %v1347, 2
        %v1403 = vsel %vm1373, %v1402, %v1401
        %v1404 = vrot.slane %v1348, 1
        %v1405 = vsel %vm1376, %v1404, %v1403
        %v1406 = vrot.slane %v1350, 7
        %v1407 = vsel %vm1358, %v1406, %v1349
        %v1408 = vrot.slane %v1351, 6
        %v1409 = vsel %vm1361, %v1408, %v1407
        %v1410 = vrot.slane %v1352, 5
        %v1411 = vsel %vm1364, %v1410, %v1409
        %v1412 = vrot.slane %v1353, 4
        %v1413 = vsel %vm1367, %v1412, %v1411
        %v1414 = vrot.slane %v1354, 3
        %v1415 = vsel %vm1370, %v1414, %v1413
        %v1416 = vrot.slane %v1355, 2
        %v1417 = vsel %vm1373, %v1416, %v1415
        %v1418 = vrot.slane %v1356, 1
        %v1419 = vsel %vm1376, %v1418, %v1417
        %v1420 = vpack.c.b16 %v1391, %v1377
        %v1421 = vpack.c.b16 %v1419, %v1405
        %v1440 = vunpack.c.l.b16 %v1270
        %v1441 = vunpack.c.l.b16 %v1271
        %v1442 = vunpack.c.l.b16 %v1272
        %v1443 = vunpack.c.l.b16 %v1273
        %v1444 = vunpack.c.l.b16 %v1274
        %v1445 = vunpack.c.l.b16 %v1275
        %v1446 = vunpack.c.l.b16 %v1276
        %v1447 = vunpack.c.l.b16 %v1277
        %v1448 = vunpack.c.l.b16 %v1278
        %v1449 = vunpack.c.l.b16 %v1279
        %v1450 = vunpack.c.l.b16 %v1280
        %v1451 = vunpack.c.l.b16 %v1281
        %v1452 = vunpack.c.l.b16 %v1282
        %v1453 = vunpack.c.l.b16 %v1283
        %v1454 = vunpack.c.l.b16 %v1284
        %v1455 = vunpack.c.l.b16 %v1285
        %v1456 = vpack.c.b16 %v1441, %v1440
        %v1457 = vpack.c.b16 %v1443, %v1442
        %v1458 = vpack.c.b16 %v1445, %v1444
        %v1459 = vpack.c.b16 %v1447, %v1446
        %v1460 = vpack.c.b16 %v1449, %v1448
        %v1461 = vpack.c.b16 %v1451, %v1450
        %v1462 = vpack.c.b16 %v1453, %v1452
        %v1463 = vpack.c.b16 %v1455, %v1454
        %1472 = vmatprep.subr.bf16.mxu0 0
        %1473 = vmatpush1.bf16.xpose.msra.mxu0 %v1456
        %1474 = vmatprep.subr.bf16.mxu0 0
        %1475 = vmatpush1.bf16.xpose.msra.mxu0 %v1457
        %1476 = vmatprep.subr.bf16.mxu0 0
        %1477 = vmatpush1.bf16.xpose.msra.mxu0 %v1458
        %1478 = vmatprep.subr.bf16.mxu0 0
        %1479 = vmatpush1.bf16.xpose.msra.mxu0 %v1459
        %1480 = vmatprep.subr.bf16.mxu0 0
        %1481 = vmatpush1.bf16.xpose.msra.mxu0 %v1460
        %1482 = vmatprep.subr.bf16.mxu0 0
        %1483 = vmatpush1.bf16.xpose.msra.mxu0 %v1461
        %1484 = vmatprep.subr.bf16.mxu0 0
        %1485 = vmatpush1.bf16.xpose.msra.mxu0 %v1462
        %1486 = vmatprep.subr.bf16.mxu0 0
        %1487 = vmatpush1.bf16.xpose.msra.mxu0 %v1463
        %1488 = vmatprep.subr.bf16.mxu0 0
        %1489 = vmatpush1.bf16.xpose.msra.mxu0 0
        %1490 = vmatprep.subr.bf16.mxu0 0
        %1491 = vmatpush1.bf16.xpose.msra.mxu0 0
        %1492 = vmatprep.subr.bf16.mxu0 0
        %1493 = vmatpush1.bf16.xpose.msra.mxu0 0
        %1494 = vmatprep.subr.bf16.mxu0 0
        %1495 = vmatpush1.bf16.xpose.msra.mxu0 0
        %1496 = vmatprep.subr.bf16.mxu0 0
        %1497 = vmatpush1.bf16.xpose.msra.mxu0 0
        %1498 = vmatprep.subr.bf16.mxu0 0
        %1499 = vmatpush1.bf16.xpose.msra.mxu0 0
        %1500 = vmatprep.subr.bf16.mxu0 0
        %1501 = vmatpush1.bf16.xpose.msra.mxu0 0
        %1502 = vmatprep.subr.bf16.mxu0 0
        %1503 = vmatpush1.bf16.xpose.msra.mxu0 0
        %1504 = vmatprep.mubr.bf16.mxu0 0
        %1505 = vmatmul.mubr.bf16.gmra.mrb[0].mxu0 %v1420
        %v1506 = vpop.f32.mrb[0].mxu0
        %v1507 = vadd.f32 %v1291, %v1506
        %v1508 = vpop.f32.mrb[0].mxu0
        %v1509 = vpop.f32.mrb[0].mxu0
        %v1510 = vadd.f32 %v1291, %v1509
        %v1511 = vpop.f32.mrb[0].mxu0
        %1512 = vmatprep.mubr.bf16.mxu0 0
        %1513 = vmatmul.mubr.bf16.gmra.mrb[0].mxu0 %v1421
        %v1514 = vpop.f32.mrb[0].mxu0
        %v1515 = vadd.f32 %v1291, %v1514
        %v1516 = vpop.f32.mrb[0].mxu0
        %v1517 = vpop.f32.mrb[0].mxu0
        %v1518 = vadd.f32 %v1291, %v1517
        %v1519 = vpop.f32.mrb[0].mxu0
        %1520 = vdwg.mxu0
        %v1521 = vmul.f32 %v1507, %v1507
        %v1522 = vmul.f32 %v1510, %v1510
        %v1523 = vmul.f32 %v1515, %v1515
        %v1524 = vmul.f32 %v1518, %v1518
        %1525 = vadd.xlane.f32.xlu0 %v1521
        %v1526 = vpop.xlane.xlu0 %1525
        %1527 = vadd.xlane.f32.xlu0 %v1522
        %v1528 = vpop.xlane.xlu0 %1527
        %1529 = vadd.xlane.f32.xlu0 %v1523
        %v1530 = vpop.xlane.xlu0 %1529
        %1531 = vadd.xlane.f32.xlu0 %v1524
        %v1532 = vpop.xlane.xlu0 %1531
        %v1533 = vrsqrt.pop %v1526
        %v1534 = vmul.f32 %v1526, %v1533
        %vm1535 = vcmp.eq.f32.partialorder %v1526, inf
        %v1536 = vsel %vm1535, %v1526, %v1534
        %vm1537 = vcmp.eq.f32.partialorder %v1526, 0.0
        %v1538 = vand.u32 %v1526, 2147483648
        %v1539 = vsel %vm1537, %v1538, %v1536
        %v1540 = vrsqrt.pop %v1528
        %v1541 = vmul.f32 %v1528, %v1540
        %vm1542 = vcmp.eq.f32.partialorder %v1528, inf
        %v1543 = vsel %vm1542, %v1528, %v1541
        %vm1544 = vcmp.eq.f32.partialorder %v1528, 0.0
        %v1545 = vand.u32 %v1528, 2147483648
        %v1546 = vsel %vm1544, %v1545, %v1543
        %v1547 = vrsqrt.pop %v1530
        %v1548 = vmul.f32 %v1530, %v1547
        %vm1549 = vcmp.eq.f32.partialorder %v1530, inf
        %v1550 = vsel %vm1549, %v1530, %v1548
        %vm1551 = vcmp.eq.f32.partialorder %v1530, 0.0
        %v1552 = vand.u32 %v1530, 2147483648
        %v1553 = vsel %vm1551, %v1552, %v1550
        %v1554 = vrsqrt.pop %v1532
        %v1555 = vmul.f32 %v1532, %v1554
        %vm1556 = vcmp.eq.f32.partialorder %v1532, inf
        %v1557 = vsel %vm1556, %v1532, %v1555
        %vm1558 = vcmp.eq.f32.partialorder %v1532, 0.0
        %v1559 = vand.u32 %v1532, 2147483648
        %v1560 = vsel %vm1558, %v1559, %v1557
        %v1561 = vadd.f32 %v1539, 1e-08
        %v1562 = vadd.f32 %v1546, 1e-08
        %v1563 = vadd.f32 %v1553, 1e-08
        %v1564 = vadd.f32 %v1560, 1e-08
        %v1565 = vrcp.pop %v1561
        %v1566 = vrcp.pop %v1562
        %v1567 = vrcp.pop %v1563
        %v1568 = vrcp.pop %v1564
        %v1569 = vld [vmem:[%s294] sm:$0xf]
        %v1570 = vld [vmem:[%s294 + $0x4] sm:$0xf]
        %v1571 = vld [vmem:[%s294 + $0x8] sm:$0xf]
        %v1572 = vld [vmem:[%s294 + $0xc] sm:$0xf]
        %v1573 = vunpack.c.l.bf16 %v1569
        %v1574 = vunpack.c.l.bf16 %v1570
        %v1575 = vunpack.c.l.bf16 %v1571
        %v1576 = vunpack.c.l.bf16 %v1572
        %v1577 = vmul.f32 %v1573, %v1573
        %v1578 = vmul.f32 %v1574, %v1574
        %v1579 = vmul.f32 %v1575, %v1575
        %v1580 = vmul.f32 %v1576, %v1576
        %1581 = vadd.xlane.f32.xlu0 %v1577
        %v1582 = vpop.xlane.xlu0 %1581
        %1583 = vadd.xlane.f32.xlu0 %v1578
        %v1584 = vpop.xlane.xlu0 %1583
        %1585 = vadd.xlane.f32.xlu0 %v1579
        %v1586 = vpop.xlane.xlu0 %1585
        %1587 = vadd.xlane.f32.xlu0 %v1580
        %v1588 = vpop.xlane.xlu0 %1587
        %v1589 = vrsqrt.pop %v1582
        %v1590 = vmul.f32 %v1582, %v1589
        %vm1591 = vcmp.eq.f32.partialorder %v1582, inf
        %v1592 = vsel %vm1591, %v1582, %v1590
        %vm1593 = vcmp.eq.f32.partialorder %v1582, 0.0
        %v1594 = vand.u32 %v1582, 2147483648
        %v1595 = vsel %vm1593, %v1594, %v1592
        %v1596 = vrsqrt.pop %v1584
        %v1597 = vmul.f32 %v1584, %v1596
        %vm1598 = vcmp.eq.f32.partialorder %v1584, inf
        %v1599 = vsel %vm1598, %v1584, %v1597
        %vm1600 = vcmp.eq.f32.partialorder %v1584, 0.0
        %v1601 = vand.u32 %v1584, 2147483648
        %v1602 = vsel %vm1600, %v1601, %v1599
        %v1603 = vrsqrt.pop %v1586
        %v1604 = vmul.f32 %v1586, %v1603
        %vm1605 = vcmp.eq.f32.partialorder %v1586, inf
        %v1606 = vsel %vm1605, %v1586, %v1604
        %vm1607 = vcmp.eq.f32.partialorder %v1586, 0.0
        %v1608 = vand.u32 %v1586, 2147483648
        %v1609 = vsel %vm1607, %v1608, %v1606
        %v1610 = vrsqrt.pop %v1588
        %v1611 = vmul.f32 %v1588, %v1610
        %vm1612 = vcmp.eq.f32.partialorder %v1588, inf
        %v1613 = vsel %vm1612, %v1588, %v1611
        %vm1614 = vcmp.eq.f32.partialorder %v1588, 0.0
        %v1615 = vand.u32 %v1588, 2147483648
        %v1616 = vsel %vm1614, %v1615, %v1613
        %v1617 = vadd.f32 %v1595, 1e-08
        %v1618 = vadd.f32 %v1602, 1e-08
        %v1619 = vadd.f32 %v1609, 1e-08
        %v1620 = vadd.f32 %v1616, 1e-08
        %v1621 = vrcp.pop %v1617
        %v1622 = vrcp.pop %v1618
        %v1623 = vrcp.pop %v1619
        %v1624 = vrcp.pop %v1620
        %v1625 = vmul.f32 %v1573, %v1621
        %v1626 = vmul.f32 %v1574, %v1622
        %v1627 = vmul.f32 %v1575, %v1623
        %v1628 = vmul.f32 %v1576, %v1624
        %v1629 = vpack.c.bf16 %v1626, %v1625
        %v1630 = vpack.c.bf16 %v1628, %v1627
        %v1633 = vunpack.c.l.b16 %v1629
        %v1634 = vunpack.c.h.b16 %v1629
        %v1635 = vunpack.c.l.b16 %v1630
        %v1636 = vunpack.c.h.b16 %v1630
        %v1637 = vpack.c.b16 %v1633, %v1633
        %v1638 = vpack.c.b16 %v1634, %v1634
        %v1639 = vpack.c.b16 %v1635, %v1635
        %v1640 = vpack.c.b16 %v1636, %v1636
        %1645 = vst [vmem:[%s330] sm:$0xf] %v1637
        %1646 = vst [vmem:[%s330 + $0x4] sm:$0xf] %v1638
        %1647 = vst [vmem:[%s330 + $0x8] sm:$0xf] %v1639
        %1648 = vst [vmem:[%s330 + $0xc] sm:$0xf] %v1640
        %v1649 = vmul.f32 %v1507, %v1565
        %v1650 = vmul.f32 %v1510, %v1566
        %v1651 = vmul.f32 %v1515, %v1567
        %v1652 = vmul.f32 %v1518, %v1568
        %v1653 = vpack.c.bf16 %v1650, %v1649
        %v1654 = vpack.c.bf16 %v1652, %v1651
        %v1657 = vunpack.c.l.b16 %v1653
        %v1658 = vunpack.c.h.b16 %v1653
        %v1659 = vunpack.c.l.b16 %v1654
        %v1660 = vunpack.c.h.b16 %v1654
        %v1661 = vpack.c.b16 %v1657, %v1657
        %v1662 = vpack.c.b16 %v1658, %v1658
        %v1663 = vpack.c.b16 %v1659, %v1659
        %v1664 = vpack.c.b16 %v1660, %v1660
        %1669 = vst [vmem:[%s337] sm:$0xf] %v1661
        %1670 = vst [vmem:[%s337 + $0x4] sm:$0xf] %v1662
        %1671 = vst [vmem:[%s337 + $0x8] sm:$0xf] %v1663
        %1672 = vst [vmem:[%s337 + $0xc] sm:$0xf] %v1664
        %s1673 = sand.u32 %s158, 1
        %s1674 = scalar_lea.sflag [#allocation4], %s1673
        %s1675 = sand.u32 %s158, 1
        %s1676 = smul.addr %s1675, 16
        %s1677 = scalar_lea.vmem [#allocation7], %s1676
        %s1678 = sand.u32 %s184, 1
        %s1679 = scalar_lea.sflag [#allocation9], %s1678
        %s1680 = sand.u32 %s184, 1
        %s1681 = smul.addr %s1680, 16
        %s1682 = scalar_lea.vmem [#allocation8], %s1681
        // Predicated region
        $region49: #{tpu_custom_call.1} parent=39 // pred_check
          %p1683 = pneg %p168
        $region50: #{tpu_custom_call.1} parent=39 // pred_check_branch
          %1685 = sbr.rel (%p1683) target = $region52
        $region51: #{tpu_custom_call.1} parent=39 // pred_region
          %s1686 = smul.u32 4, %s30
          %s1688 = ssub.s32 256, 256
          %1689 = vsyncadd %s1674, %s1688
          %s1690 = smul.addr %s1686, 64
          %s1691 = scalar_lea.hbm %s5, %s1690
          %s1692 = sshll.u32 %s1677, 4
          %s1693 = int_to_ptr.vmem [resolvable:$true] %s1692
          %1698 = dma.vmem_to_hbm [thread:$0]  %s1693, 256, %s1691, %s1674, 64, 64, 4
        $region52: #{tpu_custom_call.1} parent=39 // pred_fallthru
          _
        // Predicated region
        $region53: #{tpu_custom_call.1} parent=39 // pred_check
          %p1699 = pneg %p194
        $region54: #{tpu_custom_call.1} parent=39 // pred_check_branch
          %1701 = sbr.rel (%p1699) target = $region56
        $region55: #{tpu_custom_call.1} parent=39 // pred_region
          %s1702 = smul.u32 4, %s30
          %s1704 = ssub.s32 256, 256
          %1705 = vsyncadd %s1679, %s1704
          %s1706 = smul.addr %s1702, 64
          %s1707 = scalar_lea.hbm %s6, %s1706
          %s1708 = sshll.u32 %s1682, 4
          %s1709 = int_to_ptr.vmem [resolvable:$true] %s1708
          %1714 = dma.vmem_to_hbm [thread:$0]  %s1709, 256, %s1707, %s1679, 64, 64, 4
        $region56: #{tpu_custom_call.1} parent=39 // pred_fallthru
          _
      $region40: #{tpu_custom_call.1} parent=5 // pred_fallthru
        _
      %p1715 = scmp.le.s32.totalorder 2, %s25
      // Predicated region
      $region57: #{tpu_custom_call.1} parent=5 // pred_check
        %p1716 = pneg %p1715
      $region58: #{tpu_custom_call.1} parent=5 // pred_check_branch
        %1718 = sbr.rel (%p1716) target = $region60
      $region59: #{tpu_custom_call.1} parent=5 // pred_region
        %s1719 = ssub.s32 %s25, 2
        // Predicated region
        $region61: #{tpu_custom_call.1} parent=59 // pred_check
          %p1720 = pneg %p174
        $region62: #{tpu_custom_call.1} parent=59 // pred_check_branch
          %1722 = sbr.rel (%p1720) target = $region64
        $region63: #{tpu_custom_call.1} parent=59 // pred_region
          %s1723 = sand.u32 %s159, 1
          %s1724 = scalar_lea.sflag [#allocation4], %s1723
          %s1725 = sand.u32 %s159, 1
          %s1726 = smul.addr %s1725, 16
          %s1727 = scalar_lea.vmem [#allocation7], %s1726
          %1728 = dma.done %s1724, 256
        $region64: #{tpu_custom_call.1} parent=59 // pred_fallthru
          _
        // Predicated region
        $region65: #{tpu_custom_call.1} parent=59 // pred_check
          %p1729 = pneg %p200
        $region66: #{tpu_custom_call.1} parent=59 // pred_check_branch
          %1731 = sbr.rel (%p1729) target = $region68
        $region67: #{tpu_custom_call.1} parent=59 // pred_region
          %s1732 = sand.u32 %s185, 1
          %s1733 = scalar_lea.sflag [#allocation9], %s1732
          %s1734 = sand.u32 %s185, 1
          %s1735 = smul.addr %s1734, 16
          %s1736 = scalar_lea.vmem [#allocation8], %s1735
          %1737 = dma.done %s1733, 256
        $region68: #{tpu_custom_call.1} parent=59 // pred_fallthru
          _
      $region60: #{tpu_custom_call.1} parent=5 // pred_fallthru
        _
    $region6: #{tpu_custom_call.1} parent=1 // loop_footer
      %s29 = sadd.s32 1, %s25
    $region7: #{tpu_custom_call.1} parent=1 // loop_footer_branch
      %24 = sbr.rel target = $region3
    $region8: #{tpu_custom_call.1} parent=1 // loop_exit
      _
    %1738 = vsyncpa [#allocation3], 1
    %s1739 = scalar_lea.sflag [#allocation3], 1
    %1740 = vsyncpa %s1739, 1
    %1741 = vsyncpa [#allocation6], 1
    %s1742 = scalar_lea.sflag [#allocation6], 1
    %1743 = vsyncpa %s1742, 1
    %1744 = vsyncpa [#allocation4], 1
    %s1745 = scalar_lea.sflag [#allocation4], 1
    %1746 = vsyncpa %s1745, 1
    %1747 = vsyncpa [#allocation9], 1
    %s1748 = scalar_lea.sflag [#allocation9], 1
    %1749 = vsyncpa %s1748, 1

</llo_original>
